<compile_context>
chip_gen: v6e
topology: v6e:2x2x1
jax: 0.10.0
libtpu: 0.0.40
codegen_flags: <defaults>
</compile_context>

<pallas_src>
import functools

import jax
import jax.numpy as jnp
import numpy as np
from jax.experimental import pallas as pl
from jax.experimental.pallas import tpu as pltpu

EPS = 1e-5


def _conv_strip_kernel(xb_ref, xu_ref, xd_ref, w_ref, scale_ref, shift_ref,
                       y_ref, stats_ref, *, apply_input_bn_relu):
    """One grid step = one H-strip of one batch image.

    xb_ref    : (1, TH, W*Cin)        this strip's rows (stage dtype)
    xu_ref    : (1, TH, W*Cin)        strip above (clamped); only its last row is used
    xd_ref    : (1, TH, W*Cin)        strip below (clamped); only its first row is used
    w_ref     : (3*W*Cin, W*C2) bf16  banded block-Toeplitz conv weights (resident)
    scale_ref : (1, W*Cin) f32        folded BN scale of the previous stage (stage 2 only)
    shift_ref : (1, W*Cin) f32        folded BN shift of the previous stage (stage 2 only)
    y_ref     : (1, TH, W*C2)         raw conv output (pre-BN), lane-dense
    stats_ref : (1, 1, 2, W*C2) f32   per-strip [sum, sum-of-squares] partials (w-folded)
    """
    th = xb_ref.shape[1]
    s = pl.program_id(1)
    last = pl.num_programs(1) - 1

    def act(a):
        a = a.astype(jnp.float32)
        if apply_input_bn_relu:
            # Previous stage's BN+ReLU (mean/var folded into scale/shift by the
            # wrapper); f32 VPU math on lane-folded rows.
            a = jnp.maximum(a * scale_ref[...] + shift_ref[...], 0.0)
        return a

    body = act(xb_ref[...][0])                        # (TH, W*Cin)
    top = act(xu_ref[...][0, th - 1:th, :])           # (1, W*Cin)  row above the strip
    bot = act(xd_ref[...][0, 0:1, :])                 # (1, W*Cin)  row below the strip
    # Zero the halo rows at the image boundary ('SAME' padding in H).  Applied AFTER
    # the fused activation: the module pads conv2's already-activated input with 0.
    top = top * jnp.where(s > 0, 1.0, 0.0)
    bot = bot * jnp.where(s < last, 1.0, 0.0)

    xs = jnp.concatenate([top, body, bot], axis=0)    # (TH+2, W*Cin)

    # lhs row h = [row h-1 | row h | row h+1]; the W-padding / tap structure lives in
    # the banded rhs, so no im2col slab and no lane relayouts are needed.
    lhs = jnp.concatenate([xs[0:th], xs[1:th + 1], xs[2:th + 2]], axis=1)
    acc = jnp.dot(lhs.astype(jnp.bfloat16), w_ref[...],
                  preferred_element_type=jnp.float32)            # (TH, W*C2)

    # One-pass per-strip BN partials, stored lane-dense in one shot; the per-channel
    # reduction over the W groups happens in the wrapper, so the grid stays parallel.
    ssum = jnp.sum(acc, axis=0, keepdims=True)
    ssq = jnp.sum(acc * acc, axis=0, keepdims=True)
    stats_ref[...] = jnp.concatenate([ssum, ssq], axis=0).reshape(stats_ref.shape)

    y_ref[...] = acc.reshape(y_ref.shape).astype(y_ref.dtype)


def _conv_stage(x, w_toep, scale, shift, *, th, out_dtype, apply_input_bn_relu):
    """3x3 'SAME' conv of lane-folded `x` (N, H, W*Cin) with banded weights.

    Returns the raw (pre-BN) conv output (N, H, W*C2) and per-strip BN partials
    (N, S, 2, W*C2).
    """
    N, H, WCin = x.shape
    K3, WC2 = w_toep.shape
    assert H % th == 0
    S = H // th

    kernel = functools.partial(_conv_strip_kernel,
                               apply_input_bn_relu=apply_input_bn_relu)
    cost = pl.CostEstimate(
        flops=2 * N * H * K3 * WC2,
        transcendentals=0,
        bytes_accessed=(3 * N * H * WCin * x.dtype.itemsize + K3 * WC2 * 2
                        + N * H * WC2 * jnp.dtype(out_dtype).itemsize
                        + N * S * 2 * WC2 * 4),
    )
    return pl.pallas_call(
        kernel,
        out_shape=(jax.ShapeDtypeStruct((N, H, WC2), out_dtype),
                   jax.ShapeDtypeStruct((N, S, 2, WC2), jnp.float32)),
        grid=(N, S),
        in_specs=[
            pl.BlockSpec((1, th, WCin), lambda n, s: (n, s, 0)),                         # strip
            pl.BlockSpec((1, th, WCin), lambda n, s: (n, jnp.maximum(s - 1, 0), 0)),     # above
            pl.BlockSpec((1, th, WCin), lambda n, s: (n, jnp.minimum(s + 1, S - 1), 0)), # below
            pl.BlockSpec((K3, WC2), lambda n, s: (0, 0)),                                # weights
            pl.BlockSpec((1, WCin), lambda n, s: (0, 0)),                                # scale
            pl.BlockSpec((1, WCin), lambda n, s: (0, 0)),                                # shift
        ],
        out_specs=(
            pl.BlockSpec((1, th, WC2), lambda n, s: (n, s, 0)),
            pl.BlockSpec((1, 1, 2, WC2), lambda n, s: (n, s, 0, 0)),
        ),
        compiler_params=pltpu.CompilerParams(
            dimension_semantics=("parallel", "parallel"),
            # Tiny per-step working set at this shape; re-derive strip height vs VMEM
            # (v7x: 64 MiB physical) for realistic UNet sizes.
            vmem_limit_bytes=32 * 1024 * 1024,
        ),
        cost_estimate=cost,
    )(x, x, x, w_toep, scale, shift)


def _toeplitz_weights(w_hwio, width):
    """(3, 3, Cin, Cout) HWIO -> (3*W*Cin, W*Cout) banded block-Toeplitz matrix.

    Row index = ky*(W*Cin) + wi*Cin + ci, col index = wo*Cout + co; nonzero only when
    kx = wi - wo + 1 lies in [0, 3), i.e. the W-direction zero padding lives in the band.
    """
    kh, kw, cin, cout = w_hwio.shape
    wi = jnp.arange(width)[:, None]
    wo = jnp.arange(width)[None, :]
    kx = wi - wo + (kw // 2)                         # (W, W) tap index
    valid = (kx >= 0) & (kx < kw)
    wk = w_hwio[:, jnp.clip(kx, 0, kw - 1), :, :]    # (KH, Wi, Wo, Cin, Cout)
    wk = jnp.where(valid[None, :, :, None, None], wk, 0.0)
    t = jnp.transpose(wk, (0, 1, 3, 2, 4))           # (KH, Wi, Cin, Wo, Cout)
    return t.reshape(kh * width * cin, width * cout)


def _bn_scale_shift(stats, gamma, beta, count, c_out):
    """Fold training-mode BN (biased variance) into per-channel scale/shift."""
    t = jnp.sum(stats, axis=(0, 1))                  # (2, W*C2): reduce batch & strips
    t = t.reshape(2, -1, c_out).sum(axis=1)          # (2, C2):   reduce the W groups
    mean = t[0] / count
    # NOTE: one-pass E[x^2]-E[x]^2 in f32 (clamped >= 0); fine at BN-normalized scales.
    # Switch to a two-pass / Welford combine if conv outputs ever carry a large mean.
    var = jnp.maximum(t[1] / count - mean * mean, 0.0)
    scale = gamma * jax.lax.rsqrt(var + EPS)
    shift = beta - mean * scale
    return scale, shift


@jax.jit
def unet_encoding_block(x_nchw, w1, w2, g1, b1, g2, b2):
    """x_nchw: (N, C, H, W) f32; w1/w2 HWIO.  Returns (N, 2C, H, W) f32."""
    N, C, H, W = x_nchw.shape
    C2 = 2 * C
    count = float(N * H * W)
    th = 8 if H % 8 == 0 else H                      # H-strip height (grid = (N, H//th))

    # NCHW -> lane-folded NHWC (channels minor inside the lane axis).
    x = jnp.transpose(x_nchw, (0, 2, 3, 1)).reshape(N, H, W * C).astype(jnp.float32)

    # HWIO -> banded block-Toeplitz matrices, built once outside the kernels; bf16 MXU inputs.
    w1t = _toeplitz_weights(w1.astype(jnp.float32), W).astype(jnp.bfloat16)
    w2t = _toeplitz_weights(w2.astype(jnp.float32), W).astype(jnp.bfloat16)

    one = jnp.ones((1, W * C), jnp.float32)          # identity (unused) params for stage 1
    zero = jnp.zeros((1, W * C), jnp.float32)

    # Stage 1: conv1 + per-strip BN partials; y1 stored bf16 (it feeds the MXU anyway).
    y1, s1 = _conv_stage(x, w1t, one, zero, th=th, out_dtype=jnp.bfloat16,
                         apply_input_bn_relu=False)
    scale1, shift1 = _bn_scale_shift(s1, g1, b1, count, C2)

    # Stage 2: BN1+ReLU fused into conv2's input path; conv2 + BN partials.
    y2, s2 = _conv_stage(y1, w2t,
                         jnp.tile(scale1, W).reshape(1, W * C2),
                         jnp.tile(shift1, W).reshape(1, W * C2),
                         th=th, out_dtype=jnp.float32, apply_input_bn_relu=True)
    scale2, shift2 = _bn_scale_shift(s2, g2, b2, count, C2)

    # Final BN2 + ReLU as plain jnp so XLA fuses it into the NHWC->NCHW transpose.
    out = jnp.maximum(y2 * jnp.tile(scale2, W) + jnp.tile(shift2, W), 0.0)
    return out.reshape(N, H, W, C2).transpose(0, 3, 1, 2)


def _reference_forward(x_nchw, w1, w2, g1, b1, g2, b2, *, match_kernel):
    """Pure-JAX reference (conv + training-mode BN + relu), NCHW in/out.

    match_kernel=True mirrors the kernel's numerics (bf16 MXU inputs, f32 accumulation,
    bf16 storage of the stage-1 output); False is the pure-f32 module semantics.
    """
    x = jnp.transpose(x_nchw, (0, 2, 3, 1)).astype(jnp.float32)

    def conv(h, w):
        if match_kernel:
            h = h.astype(jnp.bfloat16)
            w = w.astype(jnp.bfloat16)
        return jax.lax.conv_general_dilated(
            h, w, window_strides=(1, 1), padding="SAME",
            dimension_numbers=("NHWC", "HWIO", "NHWC"),
            preferred_element_type=jnp.float32)

    def bn_fold(h, g, b):
        m = jnp.mean(h, axis=(0, 1, 2))
        v = jnp.maximum(jnp.mean(h * h, axis=(0, 1, 2)) - m * m, 0.0)
        scale = g * jax.lax.rsqrt(v + EPS)
        return scale, b - m * scale

    h1 = conv(x, w1)                                 # f32 accumulator (stats source)
    sc1, sh1 = bn_fold(h1, g1, b1)
    if match_kernel:                                 # the kernel stores y1 in bf16
        h1 = h1.astype(jnp.bfloat16).astype(jnp.float32)
    a1 = jnp.maximum(h1 * sc1 + sh1, 0.0)
    h2 = conv(a1, w2)
    sc2, sh2 = bn_fold(h2, g2, b2)
    a2 = jnp.maximum(h2 * sc2 + sh2, 0.0)
    return jnp.transpose(a2, (0, 3, 1, 2))


if __name__ == "__main__":
    # Small shapes: batch=2, features=4, spatial=16x16 (output channels = 8).
    N, C, H, W = 2, 4, 16, 16
    C2 = 2 * C

    key = jax.random.PRNGKey(0)
    kx, kw1, kw2 = jax.random.split(key, 3)

    x = jax.random.normal(kx, (N, C, H, W), jnp.float32)

    # Deterministic Kaiming-normal-style conv weights (fan_in, relu gain), HWIO.
    # Conv biases are zero per the module's _init_weights.
    w1 = jax.random.normal(kw1, (3, 3, C, C2), jnp.float32) * np.sqrt(2.0 / (3 * 3 * C))
    w2 = jax.random.normal(kw2, (3, 3, C2, C2), jnp.float32) * np.sqrt(2.0 / (3 * 3 * C2))

    # BatchNorm affine params: PyTorch default weight=1; bias zeroed by _init_weights.
    g1 = jnp.ones((C2,), jnp.float32)
    b1 = jnp.zeros((C2,), jnp.float32)
    g2 = jnp.ones((C2,), jnp.float32)
    b2 = jnp.zeros((C2,), jnp.float32)

    out = jax.block_until_ready(unet_encoding_block(x, w1, w2, g1, b1, g2, b2))
    assert out.shape == (N, C2, H, W), out.shape

    # Numerics-matched reference (same bf16 MXU inputs / bf16 y1 storage, f32 accumulation).
    ref_bf16 = jax.block_until_ready(
        _reference_forward(x, w1, w2, g1, b1, g2, b2, match_kernel=True))
    np.testing.assert_allclose(np.asarray(out), np.asarray(ref_bf16),
                               atol=5e-3, rtol=5e-3)

    # Pure-f32 module semantics; loose tolerance covers bf16 rounding.
    ref_f32 = jax.block_until_ready(
        _reference_forward(x, w1, w2, g1, b1, g2, b2, match_kernel=False))
    np.testing.assert_allclose(np.asarray(out), np.asarray(ref_f32),
                               atol=5e-2, rtol=5e-2)

    print("KERNEL_OK")
</pallas_src>

<mosaic_0001>
module attributes {stable_mosaic.version = 11 : i64} {
  func.func @_conv_strip_kernel(%arg0: i32, %arg1: i32, %arg2: memref<1x8x64xf32, #tpu.memory_space<vmem>>, %arg3: memref<1x8x64xf32, #tpu.memory_space<vmem>>, %arg4: memref<1x8x64xf32, #tpu.memory_space<vmem>>, %arg5: memref<192x128xbf16, #tpu.memory_space<vmem>>, %arg6: memref<1x64xf32, #tpu.memory_space<vmem>>, %arg7: memref<1x64xf32, #tpu.memory_space<vmem>>, %arg8: memref<1x8x128xbf16, #tpu.memory_space<vmem>>, %arg9: memref<1x1x2x128xf32, #tpu.memory_space<vmem>>) attributes {dimension_semantics = [#tpu.dimension_semantics<parallel>, #tpu.dimension_semantics<parallel>], iteration_bounds = array<i64: 2, 2>, scalar_prefetch = 0 : i64, scratch_operands = 0 : i64, tpu.core_type = #tpu.core_type<tc>, window_params = [{transform_indices = @transform_0, window_bounds = array<i64: 1, 8, 64>}, {transform_indices = @transform_1, window_bounds = array<i64: 1, 8, 64>}, {transform_indices = @transform_2, window_bounds = array<i64: 1, 8, 64>}, {pipeline_mode = #tpu.pipeline_mode<synchronous>, transform_indices = @transform_3, window_bounds = array<i64: 192, 128>}, {pipeline_mode = #tpu.pipeline_mode<synchronous>, transform_indices = @transform_4, window_bounds = array<i64: 1, 64>}, {pipeline_mode = #tpu.pipeline_mode<synchronous>, transform_indices = @transform_5, window_bounds = array<i64: 1, 64>}, {transform_indices = @transform_6, window_bounds = array<i64: 1, 8, 128>}, {transform_indices = @transform_7, window_bounds = array<i64: 1, 1, 2, 128>}]} {
    %c0 = arith.constant 0 : index
    %c0_0 = arith.constant 0 : index
    %c0_1 = arith.constant 0 : index
    %0 = vector.load %arg2[%c0, %c0_0, %c0_1] : memref<1x8x64xf32, #tpu.memory_space<vmem>>, vector<1x8x64xf32>
    %1 = vector.shape_cast %0 : vector<1x8x64xf32> to vector<8x64xf32>
    %c0_2 = arith.constant 0 : index
    %c0_3 = arith.constant 0 : index
    %c0_4 = arith.constant 0 : index
    %2 = vector.load %arg3[%c0_2, %c0_3, %c0_4] : memref<1x8x64xf32, #tpu.memory_space<vmem>>, vector<1x8x64xf32>
    %3 = vector.extract_strided_slice %2 {offsets = [0, 7, 0], sizes = [1, 1, 64], strides = [1, 1, 1]} : vector<1x8x64xf32> to vector<1x1x64xf32>
    %4 = vector.shape_cast %3 : vector<1x1x64xf32> to vector<1x64xf32>
    %c0_5 = arith.constant 0 : index
    %c0_6 = arith.constant 0 : index
    %c0_7 = arith.constant 0 : index
    %5 = vector.load %arg4[%c0_5, %c0_6, %c0_7] : memref<1x8x64xf32, #tpu.memory_space<vmem>>, vector<1x8x64xf32>
    %6 = vector.extract_strided_slice %5 {offsets = [0, 0, 0], sizes = [1, 1, 64], strides = [1, 1, 1]} : vector<1x8x64xf32> to vector<1x1x64xf32>
    %7 = vector.shape_cast %6 : vector<1x1x64xf32> to vector<1x64xf32>
    %c0_i32 = arith.constant 0 : i32
    %8 = arith.cmpi sgt, %arg1, %c0_i32 : i32
    %cst = arith.constant 1.000000e+00 : f32
    %cst_8 = arith.constant 0.000000e+00 : f32
    %9 = arith.select %8, %cst, %cst_8 : f32
    %10 = vector.broadcast %9 : f32 to vector<1x64xf32>
    %11 = arith.mulf %4, %10 : vector<1x64xf32>
    %c1_i32 = arith.constant 1 : i32
    %12 = arith.cmpi slt, %arg1, %c1_i32 : i32
    %cst_9 = arith.constant 1.000000e+00 : f32
    %cst_10 = arith.constant 0.000000e+00 : f32
    %13 = arith.select %12, %cst_9, %cst_10 : f32
    %14 = vector.broadcast %13 : f32 to vector<1x64xf32>
    %15 = arith.mulf %7, %14 : vector<1x64xf32>
    %16 = tpu.concatenate %11, %1, %15 in 0 : vector<1x64xf32>, vector<8x64xf32>, vector<1x64xf32> -> vector<10x64xf32>
    %17 = vector.extract_strided_slice %16 {offsets = [0, 0], sizes = [8, 64], strides = [1, 1]} : vector<10x64xf32> to vector<8x64xf32>
    %18 = vector.extract_strided_slice %16 {offsets = [1, 0], sizes = [8, 64], strides = [1, 1]} : vector<10x64xf32> to vector<8x64xf32>
    %19 = vector.extract_strided_slice %16 {offsets = [2, 0], sizes = [8, 64], strides = [1, 1]} : vector<10x64xf32> to vector<8x64xf32>
    %20 = tpu.concatenate %17, %18, %19 in 1 : vector<8x64xf32>, vector<8x64xf32>, vector<8x64xf32> -> vector<8x192xf32>
    %21 = arith.truncf %20 : vector<8x192xf32> to vector<8x192xbf16>
    %c0_11 = arith.constant 0 : index
    %c0_12 = arith.constant 0 : index
    %22 = vector.load %arg5[%c0_11, %c0_12] : memref<192x128xbf16, #tpu.memory_space<vmem>>, vector<192x128xbf16>
    %cst_13 = arith.constant dense<0.000000e+00> : vector<8x128xf32>
    %23 = tpu.matmul %21, %22, %cst_13 {dimension_numbers = #tpu.dot_dimension_numbers<[1], [0], [0], [1], [0, 0, 1, 1], [], []>} : vector<8x192xbf16>, vector<192x128xbf16>, vector<8x128xf32> -> vector<8x128xf32>
    %cst_14 = arith.constant dense<0.000000e+00> : vector<128xf32>
    %24 = vector.multi_reduction <add>, %23, %cst_14 [0] : vector<8x128xf32> to vector<128xf32>
    %25 = vector.shape_cast %24 : vector<128xf32> to vector<1x128xf32>
    %26 = arith.mulf %23, %23 : vector<8x128xf32>
    %cst_15 = arith.constant dense<0.000000e+00> : vector<128xf32>
    %27 = vector.multi_reduction <add>, %26, %cst_15 [0] : vector<8x128xf32> to vector<128xf32>
    %28 = vector.shape_cast %27 : vector<128xf32> to vector<1x128xf32>
    %29 = tpu.concatenate %25, %28 in 0 : vector<1x128xf32>, vector<1x128xf32> -> vector<2x128xf32>
    %30 = vector.shape_cast %29 : vector<2x128xf32> to vector<1x1x2x128xf32>
    %c0_16 = arith.constant 0 : index
    %c0_17 = arith.constant 0 : index
    %c0_18 = arith.constant 0 : index
    %c0_19 = arith.constant 0 : index
    %31 = vector.load %arg9[%c0_16, %c0_17, %c0_18, %c0_19] : memref<1x1x2x128xf32, #tpu.memory_space<vmem>>, vector<1x1x2x128xf32>
    tpu.vector_store %arg9[%c0_16, %c0_17, %c0_18, %c0_19], %30 {strides = array<i32>} : memref<1x1x2x128xf32, #tpu.memory_space<vmem>>, vector<1x1x2x128xf32>,
    %32 = vector.shape_cast %23 : vector<8x128xf32> to vector<1x8x128xf32>
    %33 = arith.truncf %32 : vector<1x8x128xf32> to vector<1x8x128xbf16>
    %c0_20 = arith.constant 0 : index
    %c0_21 = arith.constant 0 : index
    %c0_22 = arith.constant 0 : index
    %34 = vector.load %arg8[%c0_20, %c0_21, %c0_22] : memref<1x8x128xbf16, #tpu.memory_space<vmem>>, vector<1x8x128xbf16>
    tpu.vector_store %arg8[%c0_20, %c0_21, %c0_22], %33 {strides = array<i32>} : memref<1x8x128xbf16, #tpu.memory_space<vmem>>, vector<1x8x128xbf16>,
    return
  }
  func.func @transform_0(%arg0: i32, %arg1: i32) -> (i32, i32, i32) {
    %c0_i32 = arith.constant 0 : i32
    %c0_i32_0 = arith.constant 0 : i32
    return %arg0, %arg1, %c0_i32 : i32, i32, i32
  }
  func.func @transform_1(%arg0: i32, %arg1: i32) -> (i32, i32, i32) {
    %c1_i32 = arith.constant 1 : i32
    %0 = arith.subi %arg1, %c1_i32 : i32
    %c0_i32 = arith.constant 0 : i32
    %1 = arith.maxsi %0, %c0_i32 : i32
    %c0_i32_0 = arith.constant 0 : i32
    %c0_i32_1 = arith.constant 0 : i32
    return %arg0, %1, %c0_i32_0 : i32, i32, i32
  }
  func.func @transform_2(%arg0: i32, %arg1: i32) -> (i32, i32, i32) {
    %c1_i32 = arith.constant 1 : i32
    %0 = arith.addi %arg1, %c1_i32 : i32
    %c1_i32_0 = arith.constant 1 : i32
    %1 = arith.minsi %0, %c1_i32_0 : i32
    %c0_i32 = arith.constant 0 : i32
    %c0_i32_1 = arith.constant 0 : i32
    return %arg0, %1, %c0_i32 : i32, i32, i32
  }
  func.func @transform_3(%arg0: i32, %arg1: i32) -> (i32, i32) {
    %c0_i32 = arith.constant 0 : i32
    %c0_i32_0 = arith.constant 0 : i32
    %c0_i32_1 = arith.constant 0 : i32
    return %c0_i32, %c0_i32_0 : i32, i32
  }
  func.func @transform_4(%arg0: i32, %arg1: i32) -> (i32, i32) {
    %c0_i32 = arith.constant 0 : i32
    %c0_i32_0 = arith.constant 0 : i32
    %c0_i32_1 = arith.constant 0 : i32
    return %c0_i32, %c0_i32_0 : i32, i32
  }
  func.func @transform_5(%arg0: i32, %arg1: i32) -> (i32, i32) {
    %c0_i32 = arith.constant 0 : i32
    %c0_i32_0 = arith.constant 0 : i32
    %c0_i32_1 = arith.constant 0 : i32
    return %c0_i32, %c0_i32_0 : i32, i32
  }
  func.func @transform_6(%arg0: i32, %arg1: i32) -> (i32, i32, i32) {
    %c0_i32 = arith.constant 0 : i32
    %c0_i32_0 = arith.constant 0 : i32
    return %arg0, %arg1, %c0_i32 : i32, i32, i32
  }
  func.func @transform_7(%arg0: i32, %arg1: i32) -> (i32, i32, i32, i32) {
    %c0_i32 = arith.constant 0 : i32
    %c0_i32_0 = arith.constant 0 : i32
    %c0_i32_1 = arith.constant 0 : i32
    return %arg0, %arg1, %c0_i32, %c0_i32_0 : i32, i32, i32, i32
  }
}

module attributes {stable_mosaic.version = 11 : i64} {
  func.func @_conv_strip_kernel(%arg0: i32, %arg1: i32, %arg2: memref<1x8x128xbf16, #tpu.memory_space<vmem>>, %arg3: memref<1x8x128xbf16, #tpu.memory_space<vmem>>, %arg4: memref<1x8x128xbf16, #tpu.memory_space<vmem>>, %arg5: memref<384x128xbf16, #tpu.memory_space<vmem>>, %arg6: memref<1x128xf32, #tpu.memory_space<vmem>>, %arg7: memref<1x128xf32, #tpu.memory_space<vmem>>, %arg8: memref<1x8x128xf32, #tpu.memory_space<vmem>>, %arg9: memref<1x1x2x128xf32, #tpu.memory_space<vmem>>) attributes {dimension_semantics = [#tpu.dimension_semantics<parallel>, #tpu.dimension_semantics<parallel>], iteration_bounds = array<i64: 2, 2>, scalar_prefetch = 0 : i64, scratch_operands = 0 : i64, tpu.core_type = #tpu.core_type<tc>, window_params = [{transform_indices = @transform_0, window_bounds = array<i64: 1, 8, 128>}, {transform_indices = @transform_1, window_bounds = array<i64: 1, 8, 128>}, {transform_indices = @transform_2, window_bounds = array<i64: 1, 8, 128>}, {pipeline_mode = #tpu.pipeline_mode<synchronous>, transform_indices = @transform_3, window_bounds = array<i64: 384, 128>}, {pipeline_mode = #tpu.pipeline_mode<synchronous>, transform_indices = @transform_4, window_bounds = array<i64: 1, 128>}, {pipeline_mode = #tpu.pipeline_mode<synchronous>, transform_indices = @transform_5, window_bounds = array<i64: 1, 128>}, {transform_indices = @transform_6, window_bounds = array<i64: 1, 8, 128>}, {transform_indices = @transform_7, window_bounds = array<i64: 1, 1, 2, 128>}]} {
    %c0 = arith.constant 0 : index
    %c0_0 = arith.constant 0 : index
    %c0_1 = arith.constant 0 : index
    %0 = vector.load %arg2[%c0, %c0_0, %c0_1] : memref<1x8x128xbf16, #tpu.memory_space<vmem>>, vector<1x8x128xbf16>
    %1 = vector.shape_cast %0 : vector<1x8x128xbf16> to vector<8x128xbf16>
    %2 = arith.extf %1 : vector<8x128xbf16> to vector<8x128xf32>
    %c0_2 = arith.constant 0 : index
    %c0_3 = arith.constant 0 : index
    %3 = vector.load %arg6[%c0_2, %c0_3] : memref<1x128xf32, #tpu.memory_space<vmem>>, vector<1x128xf32>
    %4 = vector.broadcast %3 : vector<1x128xf32> to vector<8x128xf32>
    %5 = arith.mulf %2, %4 : vector<8x128xf32>
    %c0_4 = arith.constant 0 : index
    %c0_5 = arith.constant 0 : index
    %6 = vector.load %arg7[%c0_4, %c0_5] : memref<1x128xf32, #tpu.memory_space<vmem>>, vector<1x128xf32>
    %7 = vector.broadcast %6 : vector<1x128xf32> to vector<8x128xf32>
    %8 = arith.addf %5, %7 : vector<8x128xf32>
    %cst = arith.constant 0.000000e+00 : f32
    %9 = vector.broadcast %cst : f32 to vector<8x128xf32>
    %10 = arith.maximumf %8, %9 : vector<8x128xf32>
    %c0_6 = arith.constant 0 : index
    %c0_7 = arith.constant 0 : index
    %c0_8 = arith.constant 0 : index
    %11 = vector.load %arg3[%c0_6, %c0_7, %c0_8] : memref<1x8x128xbf16, #tpu.memory_space<vmem>>, vector<1x8x128xbf16>
    %12 = vector.extract_strided_slice %11 {offsets = [0, 7, 0], sizes = [1, 1, 128], strides = [1, 1, 1]} : vector<1x8x128xbf16> to vector<1x1x128xbf16>
    %13 = vector.shape_cast %12 : vector<1x1x128xbf16> to vector<1x128xbf16>
    %14 = arith.extf %13 : vector<1x128xbf16> to vector<1x128xf32>
    %c0_9 = arith.constant 0 : index
    %c0_10 = arith.constant 0 : index
    %15 = vector.load %arg6[%c0_9, %c0_10] : memref<1x128xf32, #tpu.memory_space<vmem>>, vector<1x128xf32>
    %16 = arith.mulf %14, %15 : vector<1x128xf32>
    %c0_11 = arith.constant 0 : index
    %c0_12 = arith.constant 0 : index
    %17 = vector.load %arg7[%c0_11, %c0_12] : memref<1x128xf32, #tpu.memory_space<vmem>>, vector<1x128xf32>
    %18 = arith.addf %16, %17 : vector<1x128xf32>
    %cst_13 = arith.constant 0.000000e+00 : f32
    %19 = vector.broadcast %cst_13 : f32 to vector<1x128xf32>
    %20 = arith.maximumf %18, %19 : vector<1x128xf32>
    %c0_14 = arith.constant 0 : index
    %c0_15 = arith.constant 0 : index
    %c0_16 = arith.constant 0 : index
    %21 = vector.load %arg4[%c0_14, %c0_15, %c0_16] : memref<1x8x128xbf16, #tpu.memory_space<vmem>>, vector<1x8x128xbf16>
    %22 = vector.extract_strided_slice %21 {offsets = [0, 0, 0], sizes = [1, 1, 128], strides = [1, 1, 1]} : vector<1x8x128xbf16> to vector<1x1x128xbf16>
    %23 = vector.shape_cast %22 : vector<1x1x128xbf16> to vector<1x128xbf16>
    %24 = arith.extf %23 : vector<1x128xbf16> to vector<1x128xf32>
    %c0_17 = arith.constant 0 : index
    %c0_18 = arith.constant 0 : index
    %25 = vector.load %arg6[%c0_17, %c0_18] : memref<1x128xf32, #tpu.memory_space<vmem>>, vector<1x128xf32>
    %26 = arith.mulf %24, %25 : vector<1x128xf32>
    %c0_19 = arith.constant 0 : index
    %c0_20 = arith.constant 0 : index
    %27 = vector.load %arg7[%c0_19, %c0_20] : memref<1x128xf32, #tpu.memory_space<vmem>>, vector<1x128xf32>
    %28 = arith.addf %26, %27 : vector<1x128xf32>
    %cst_21 = arith.constant 0.000000e+00 : f32
    %29 = vector.broadcast %cst_21 : f32 to vector<1x128xf32>
    %30 = arith.maximumf %28, %29 : vector<1x128xf32>
    %c0_i32 = arith.constant 0 : i32
    %31 = arith.cmpi sgt, %arg1, %c0_i32 : i32
    %cst_22 = arith.constant 1.000000e+00 : f32
    %cst_23 = arith.constant 0.000000e+00 : f32
    %32 = arith.select %31, %cst_22, %cst_23 : f32
    %33 = vector.broadcast %32 : f32 to vector<1x128xf32>
    %34 = arith.mulf %20, %33 : vector<1x128xf32>
    %c1_i32 = arith.constant 1 : i32
    %35 = arith.cmpi slt, %arg1, %c1_i32 : i32
    %cst_24 = arith.constant 1.000000e+00 : f32
    %cst_25 = arith.constant 0.000000e+00 : f32
    %36 = arith.select %35, %cst_24, %cst_25 : f32
    %37 = vector.broadcast %36 : f32 to vector<1x128xf32>
    %38 = arith.mulf %30, %37 : vector<1x128xf32>
    %39 = tpu.concatenate %34, %10, %38 in 0 : vector<1x128xf32>, vector<8x128xf32>, vector<1x128xf32> -> vector<10x128xf32>
    %40 = vector.extract_strided_slice %39 {offsets = [0, 0], sizes = [8, 128], strides = [1, 1]} : vector<10x128xf32> to vector<8x128xf32>
    %41 = vector.extract_strided_slice %39 {offsets = [1, 0], sizes = [8, 128], strides = [1, 1]} : vector<10x128xf32> to vector<8x128xf32>
    %42 = vector.extract_strided_slice %39 {offsets = [2, 0], sizes = [8, 128], strides = [1, 1]} : vector<10x128xf32> to vector<8x128xf32>
    %43 = tpu.concatenate %40, %41, %42 in 1 : vector<8x128xf32>, vector<8x128xf32>, vector<8x128xf32> -> vector<8x384xf32>
    %44 = arith.truncf %43 : vector<8x384xf32> to vector<8x384xbf16>
    %c0_26 = arith.constant 0 : index
    %c0_27 = arith.constant 0 : index
    %45 = vector.load %arg5[%c0_26, %c0_27] : memref<384x128xbf16, #tpu.memory_space<vmem>>, vector<384x128xbf16>
    %cst_28 = arith.constant dense<0.000000e+00> : vector<8x128xf32>
    %46 = tpu.matmul %44, %45, %cst_28 {dimension_numbers = #tpu.dot_dimension_numbers<[1], [0], [0], [1], [0, 0, 1, 1], [], []>} : vector<8x384xbf16>, vector<384x128xbf16>, vector<8x128xf32> -> vector<8x128xf32>
    %cst_29 = arith.constant dense<0.000000e+00> : vector<128xf32>
    %47 = vector.multi_reduction <add>, %46, %cst_29 [0] : vector<8x128xf32> to vector<128xf32>
    %48 = vector.shape_cast %47 : vector<128xf32> to vector<1x128xf32>
    %49 = arith.mulf %46, %46 : vector<8x128xf32>
    %cst_30 = arith.constant dense<0.000000e+00> : vector<128xf32>
    %50 = vector.multi_reduction <add>, %49, %cst_30 [0] : vector<8x128xf32> to vector<128xf32>
    %51 = vector.shape_cast %50 : vector<128xf32> to vector<1x128xf32>
    %52 = tpu.concatenate %48, %51 in 0 : vector<1x128xf32>, vector<1x128xf32> -> vector<2x128xf32>
    %53 = vector.shape_cast %52 : vector<2x128xf32> to vector<1x1x2x128xf32>
    %c0_31 = arith.constant 0 : index
    %c0_32 = arith.constant 0 : index
    %c0_33 = arith.constant 0 : index
    %c0_34 = arith.constant 0 : index
    %54 = vector.load %arg9[%c0_31, %c0_32, %c0_33, %c0_34] : memref<1x1x2x128xf32, #tpu.memory_space<vmem>>, vector<1x1x2x128xf32>
    tpu.vector_store %arg9[%c0_31, %c0_32, %c0_33, %c0_34], %53 {strides = array<i32>} : memref<1x1x2x128xf32, #tpu.memory_space<vmem>>, vector<1x1x2x128xf32>,
    %55 = vector.shape_cast %46 : vector<8x128xf32> to vector<1x8x128xf32>
    %c0_35 = arith.constant 0 : index
    %c0_36 = arith.constant 0 : index
    %c0_37 = arith.constant 0 : index
    %56 = vector.load %arg8[%c0_35, %c0_36, %c0_37] : memref<1x8x128xf32, #tpu.memory_space<vmem>>, vector<1x8x128xf32>
    tpu.vector_store %arg8[%c0_35, %c0_36, %c0_37], %55 {strides = array<i32>} : memref<1x8x128xf32, #tpu.memory_space<vmem>>, vector<1x8x128xf32>,
    return
  }
  func.func @transform_0(%arg0: i32, %arg1: i32) -> (i32, i32, i32) {
    %c0_i32 = arith.constant 0 : i32
    %c0_i32_0 = arith.constant 0 : i32
    return %arg0, %arg1, %c0_i32 : i32, i32, i32
  }
  func.func @transform_1(%arg0: i32, %arg1: i32) -> (i32, i32, i32) {
    %c1_i32 = arith.constant 1 : i32
    %0 = arith.subi %arg1, %c1_i32 : i32
    %c0_i32 = arith.constant 0 : i32
    %1 = arith.maxsi %0, %c0_i32 : i32
    %c0_i32_0 = arith.constant 0 : i32
    %c0_i32_1 = arith.constant 0 : i32
    return %arg0, %1, %c0_i32_0 : i32, i32, i32
  }
  func.func @transform_2(%arg0: i32, %arg1: i32) -> (i32, i32, i32) {
    %c1_i32 = arith.constant 1 : i32
    %0 = arith.addi %arg1, %c1_i32 : i32
    %c1_i32_0 = arith.constant 1 : i32
    %1 = arith.minsi %0, %c1_i32_0 : i32
    %c0_i32 = arith.constant 0 : i32
    %c0_i32_1 = arith.constant 0 : i32
    return %arg0, %1, %c0_i32 : i32, i32, i32
  }
  func.func @transform_3(%arg0: i32, %arg1: i32) -> (i32, i32) {
    %c0_i32 = arith.constant 0 : i32
    %c0_i32_0 = arith.constant 0 : i32
    %c0_i32_1 = arith.constant 0 : i32
    return %c0_i32, %c0_i32_0 : i32, i32
  }
  func.func @transform_4(%arg0: i32, %arg1: i32) -> (i32, i32) {
    %c0_i32 = arith.constant 0 : i32
    %c0_i32_0 = arith.constant 0 : i32
    %c0_i32_1 = arith.constant 0 : i32
    return %c0_i32, %c0_i32_0 : i32, i32
  }
  func.func @transform_5(%arg0: i32, %arg1: i32) -> (i32, i32) {
    %c0_i32 = arith.constant 0 : i32
    %c0_i32_0 = arith.constant 0 : i32
    %c0_i32_1 = arith.constant 0 : i32
    return %c0_i32, %c0_i32_0 : i32, i32
  }
  func.func @transform_6(%arg0: i32, %arg1: i32) -> (i32, i32, i32) {
    %c0_i32 = arith.constant 0 : i32
    %c0_i32_0 = arith.constant 0 : i32
    return %arg0, %arg1, %c0_i32 : i32, i32, i32
  }
  func.func @transform_7(%arg0: i32, %arg1: i32) -> (i32, i32, i32, i32) {
    %c0_i32 = arith.constant 0 : i32
    %c0_i32_0 = arith.constant 0 : i32
    %c0_i32_1 = arith.constant 0 : i32
    return %arg0, %arg1, %c0_i32, %c0_i32_0 : i32, i32, i32, i32
  }
}

</mosaic_0001>

<llo_original>
// kernel: unet_encoding_block.2
$region0: #{unet_encoding_block.2}
  #allocation0 [shape = 'u32[]', space=smem, size = 0x4, offset = 0x4, fixed_abs, tag = 'smem constant byte address 0x4 - core index']
  #allocation1 [shape = 'u32[144,128]{1,0:T(1,128)}', space=vmem, size = 0x12000, scoped, tag = 'internal scratch']
  %s0 = inlined_call_operand.vmem [shape: f32[2,16,64], index: 0, kind: input, shape index: {}, may-alias: {0,1,2}]
  %s1 = inlined_call_operand.vmem [shape: f32[2,16,64], index: 1, kind: input, shape index: {}, may-alias: {0,1,2}]
  %s2 = inlined_call_operand.vmem [shape: f32[2,16,64], index: 2, kind: input, shape index: {}, may-alias: {0,1,2}]
  %s3 = inlined_call_operand.vmem [shape: bf16[192,128], index: 3, kind: input, shape index: {}]
  %s4 = inlined_call_operand.vmem [shape: f32[1,64], index: 4, kind: input, shape index: {}]
  %s5 = inlined_call_operand.vmem [shape: f32[1,64], index: 5, kind: input, shape index: {}]
  %s6 = inlined_call_operand.vmem [shape: bf16[2,16,128], index: 6, kind: output, shape index: {0}]
  %s7 = inlined_call_operand.vmem [shape: f32[2,2,2,128], index: 7, kind: output, shape index: {1}]
  %8 = xla_tuple %s6, %s7
  %s9 = sld [smem:[#allocation0]]
  $region65: #{unet_encoding_block.2} parent=0
    _
  %s11 = ssub.s32 1, %s9
  %s12 = scalar_select 0, %s11, %s9
  loop: start=0, step=1, limit=6
  $region2: #{unet_encoding_block.2} parent=0 // loop_pre_header
    _
  $region3: #{unet_encoding_block.2} parent=0 // loop_header
    %s14 = sphi 0, %s18
    %p15 = scmp.ge.s32.totalorder %s14, 6
    %s21 = sphi 0, %s33
    %s22 = sphi 0, %s29
    %s23 = sphi 0, %s21
    %s24 = sphi 0, %s22
    %s25 = sphi 0, %s23
    %s26 = sphi 0, %s24
    %s38 = sphi 0, %s40
    %s41 = sphi 0, %s38
    %s42 = sphi 0, %s41
    %s58 = sphi 0, %s42
    %s72 = sphi 0, %s74
    %s75 = sphi 0, %s72
    %s76 = sphi 0, %s75
    %s92 = sphi 0, %s76
    %s106 = sphi 0, %s108
    %s109 = sphi 0, %s106
    %s110 = sphi 0, %s109
    %s126 = sphi 0, %s110
    %s130 = sphi 0, %s130
    %s132 = sphi 0, %s130
    %s133 = sphi 0, %s132
    %s147 = sphi 0, %s133
    %s151 = sphi 0, %s151
    %s153 = sphi 0, %s151
    %s154 = sphi 0, %s153
    %s168 = sphi 0, %s154
    %s172 = sphi 0, %s172
    %s174 = sphi 0, %s172
    %s175 = sphi 0, %s174
    %s189 = sphi 0, %s175
    %s197 = sphi 0, %s199
    %s200 = sphi 0, %s197
    %s201 = sphi 0, %s200
    %s217 = sphi 0, %s201
    %s225 = sphi 0, %s227
    %s228 = sphi 0, %s225
    %s229 = sphi 0, %s228
    %s245 = sphi 0, %s229
  $region4: #{unet_encoding_block.2} parent=0 // loop_header_branch
    %17 = sbr.rel (%p15) target = $region8
  $region5: #{unet_encoding_block.2} parent=0 // loop_body
    %s19 = ssub.s32 %s14, 1
    %s20 = ssub.s32 %s14, 2
    %s27 = sadd.s32 1, %s22
    %p28 = scmp.ge.s32.totalorder %s27, 2
    %s29 = scalar_select %p28, 0, %s27
    %s30 = sadd.s32 1, %s21
    %s31 = scalar_select %p28, %s30, %s21
    %p32 = scmp.ge.s32.totalorder %s31, 2
    %s33 = scalar_select %p32, 0, %s31
    %s34 = ssub.s32 %s21, %s33
    %s35 = ssub.s32 %s22, %s29
    %s36 = sor.u32 %s34, %s35
    %p37 = scmp.eq.s32.totalorder %s36, 0
    %s39 = sadd.s32 %s38, 1
    %s40 = scalar_select %p37, %s38, %s39
    %p43 = pneg %p37
    %p44 = scmp.eq.s32.totalorder %s14, 3
    %p45 = por %p43, %p44
    %p46 = scmp.ne.s32.totalorder %s38, %s41
    %p47 = scmp.eq.s32.totalorder %s14, 0
    %p48 = por %p46, %p47
    %p49 = scmp.ne.s32.totalorder %s38, %s41
    %p50 = scmp.eq.s32.totalorder %s19, 3
    %p51 = por %p49, %p50
    %p52 = scmp.ne.s32.totalorder %s41, %s42
    %p53 = scmp.eq.s32.totalorder %s19, 0
    %p54 = por %p52, %p53
    %p55 = scmp.ne.s32.totalorder %s41, %s42
    %p56 = scmp.eq.s32.totalorder %s20, 3
    %p57 = por %p55, %p56
    %p59 = scmp.ne.s32.totalorder %s42, %s58
    %p60 = scmp.eq.s32.totalorder %s20, 0
    %p61 = por %p59, %p60
    %s62 = ssub.s32 %s22, 1
    %p63 = scmp.gt.s32.totalorder %s62, 0
    %s64 = scalar_select %p63, %s62, 0
    %s65 = ssub.s32 %s29, 1
    %p66 = scmp.gt.s32.totalorder %s65, 0
    %s67 = scalar_select %p66, %s65, 0
    %s68 = ssub.s32 %s21, %s33
    %s69 = ssub.s32 %s64, %s67
    %s70 = sor.u32 %s68, %s69
    %p71 = scmp.eq.s32.totalorder %s70, 0
    %s73 = sadd.s32 %s72, 1
    %s74 = scalar_select %p71, %s72, %s73
    %p77 = pneg %p71
    %p78 = scmp.eq.s32.totalorder %s14, 3
    %p79 = por %p77, %p78
    %p80 = scmp.ne.s32.totalorder %s72, %s75
    %p81 = scmp.eq.s32.totalorder %s14, 0
    %p82 = por %p80, %p81
    %p83 = scmp.ne.s32.totalorder %s72, %s75
    %p84 = scmp.eq.s32.totalorder %s19, 3
    %p85 = por %p83, %p84
    %p86 = scmp.ne.s32.totalorder %s75, %s76
    %p87 = scmp.eq.s32.totalorder %s19, 0
    %p88 = por %p86, %p87
    %p89 = scmp.ne.s32.totalorder %s75, %s76
    %p90 = scmp.eq.s32.totalorder %s20, 3
    %p91 = por %p89, %p90
    %p93 = scmp.ne.s32.totalorder %s76, %s92
    %p94 = scmp.eq.s32.totalorder %s20, 0
    %p95 = por %p93, %p94
    %s96 = sadd.s32 %s22, 1
    %p97 = scmp.lt.s32.totalorder %s96, 1
    %s98 = scalar_select %p97, %s96, 1
    %s99 = sadd.s32 %s29, 1
    %p100 = scmp.lt.s32.totalorder %s99, 1
    %s101 = scalar_select %p100, %s99, 1
    %s102 = ssub.s32 %s21, %s33
    %s103 = ssub.s32 %s98, %s101
    %s104 = sor.u32 %s102, %s103
    %p105 = scmp.eq.s32.totalorder %s104, 0
    %s107 = sadd.s32 %s106, 1
    %s108 = scalar_select %p105, %s106, %s107
    %p111 = pneg %p105
    %p112 = scmp.eq.s32.totalorder %s14, 3
    %p113 = por %p111, %p112
    %p114 = scmp.ne.s32.totalorder %s106, %s109
    %p115 = scmp.eq.s32.totalorder %s14, 0
    %p116 = por %p114, %p115
    %p117 = scmp.ne.s32.totalorder %s106, %s109
    %p118 = scmp.eq.s32.totalorder %s19, 3
    %p119 = por %p117, %p118
    %p120 = scmp.ne.s32.totalorder %s109, %s110
    %p121 = scmp.eq.s32.totalorder %s19, 0
    %p122 = por %p120, %p121
    %p123 = scmp.ne.s32.totalorder %s109, %s110
    %p124 = scmp.eq.s32.totalorder %s20, 3
    %p125 = por %p123, %p124
    %p127 = scmp.ne.s32.totalorder %s110, %s126
    %p128 = scmp.eq.s32.totalorder %s20, 0
    %p129 = por %p127, %p128
    %s131 = sadd.s32 %s130, 1
    %p134 = scmp.eq.s32.totalorder %s14, 3
    %p135 = scmp.ne.s32.totalorder %s130, %s132
    %p136 = scmp.eq.s32.totalorder %s14, 0
    %p137 = por %p135, %p136
    %p138 = scmp.ne.s32.totalorder %s130, %s132
    %p139 = scmp.eq.s32.totalorder %s19, 3
    %p140 = por %p138, %p139
    %p141 = scmp.ne.s32.totalorder %s132, %s133
    %p142 = scmp.eq.s32.totalorder %s19, 0
    %p143 = por %p141, %p142
    %p144 = scmp.ne.s32.totalorder %s132, %s133
    %p145 = scmp.eq.s32.totalorder %s20, 3
    %p146 = por %p144, %p145
    %p148 = scmp.ne.s32.totalorder %s133, %s147
    %p149 = scmp.eq.s32.totalorder %s20, 0
    %p150 = por %p148, %p149
    %s152 = sadd.s32 %s151, 1
    %p155 = scmp.eq.s32.totalorder %s14, 3
    %p156 = scmp.ne.s32.totalorder %s151, %s153
    %p157 = scmp.eq.s32.totalorder %s14, 0
    %p158 = por %p156, %p157
    %p159 = scmp.ne.s32.totalorder %s151, %s153
    %p160 = scmp.eq.s32.totalorder %s19, 3
    %p161 = por %p159, %p160
    %p162 = scmp.ne.s32.totalorder %s153, %s154
    %p163 = scmp.eq.s32.totalorder %s19, 0
    %p164 = por %p162, %p163
    %p165 = scmp.ne.s32.totalorder %s153, %s154
    %p166 = scmp.eq.s32.totalorder %s20, 3
    %p167 = por %p165, %p166
    %p169 = scmp.ne.s32.totalorder %s154, %s168
    %p170 = scmp.eq.s32.totalorder %s20, 0
    %p171 = por %p169, %p170
    %s173 = sadd.s32 %s172, 1
    %p176 = scmp.eq.s32.totalorder %s14, 3
    %p177 = scmp.ne.s32.totalorder %s172, %s174
    %p178 = scmp.eq.s32.totalorder %s14, 0
    %p179 = por %p177, %p178
    %p180 = scmp.ne.s32.totalorder %s172, %s174
    %p181 = scmp.eq.s32.totalorder %s19, 3
    %p182 = por %p180, %p181
    %p183 = scmp.ne.s32.totalorder %s174, %s175
    %p184 = scmp.eq.s32.totalorder %s19, 0
    %p185 = por %p183, %p184
    %p186 = scmp.ne.s32.totalorder %s174, %s175
    %p187 = scmp.eq.s32.totalorder %s20, 3
    %p188 = por %p186, %p187
    %p190 = scmp.ne.s32.totalorder %s175, %s189
    %p191 = scmp.eq.s32.totalorder %s20, 0
    %p192 = por %p190, %p191
    %s193 = ssub.s32 %s21, %s33
    %s194 = ssub.s32 %s22, %s29
    %s195 = sor.u32 %s193, %s194
    %p196 = scmp.eq.s32.totalorder %s195, 0
    %s198 = sadd.s32 %s197, 1
    %s199 = scalar_select %p196, %s197, %s198
    %p202 = pneg %p196
    %p203 = scmp.eq.s32.totalorder %s14, 3
    %p204 = por %p202, %p203
    %p205 = scmp.ne.s32.totalorder %s197, %s200
    %p206 = scmp.eq.s32.totalorder %s14, 0
    %p207 = por %p205, %p206
    %p208 = scmp.ne.s32.totalorder %s197, %s200
    %p209 = scmp.eq.s32.totalorder %s19, 3
    %p210 = por %p208, %p209
    %p211 = scmp.ne.s32.totalorder %s200, %s201
    %p212 = scmp.eq.s32.totalorder %s19, 0
    %p213 = por %p211, %p212
    %p214 = scmp.ne.s32.totalorder %s200, %s201
    %p215 = scmp.eq.s32.totalorder %s20, 3
    %p216 = por %p214, %p215
    %p218 = scmp.ne.s32.totalorder %s201, %s217
    %p219 = scmp.eq.s32.totalorder %s20, 0
    %p220 = por %p218, %p219
    %s221 = ssub.s32 %s21, %s33
    %s222 = ssub.s32 %s22, %s29
    %s223 = sor.u32 %s221, %s222
    %p224 = scmp.eq.s32.totalorder %s223, 0
    %s226 = sadd.s32 %s225, 1
    %s227 = scalar_select %p224, %s225, %s226
    %p230 = pneg %p224
    %p231 = scmp.eq.s32.totalorder %s14, 3
    %p232 = por %p230, %p231
    %p233 = scmp.ne.s32.totalorder %s225, %s228
    %p234 = scmp.eq.s32.totalorder %s14, 0
    %p235 = por %p233, %p234
    %p236 = scmp.ne.s32.totalorder %s225, %s228
    %p237 = scmp.eq.s32.totalorder %s19, 3
    %p238 = por %p236, %p237
    %p239 = scmp.ne.s32.totalorder %s228, %s229
    %p240 = scmp.eq.s32.totalorder %s19, 0
    %p241 = por %p239, %p240
    %p242 = scmp.ne.s32.totalorder %s228, %s229
    %p243 = scmp.eq.s32.totalorder %s20, 3
    %p244 = por %p242, %p243
    %p246 = scmp.ne.s32.totalorder %s229, %s245
    %p247 = scmp.eq.s32.totalorder %s20, 0
    %p248 = por %p246, %p247
    %p249 = scmp.le.s32.totalorder 1, %s14
    %p250 = scmp.lt.s32.totalorder %s14, 5
    %p251 = pnand %p249, %p250
    %p252 = pneg %p251
    // Predicated region
    $region9: #{unet_encoding_block.2} parent=5 // pred_check
      _
    $region10: #{unet_encoding_block.2} parent=5 // pred_check_branch
      %254 = sbr.rel (%p251) target = $region12
    $region11: #{unet_encoding_block.2} parent=5 // pred_region
      %s255 = ssub.s32 %s14, 1
      // Predicated region
      $region13: #{unet_encoding_block.2} parent=11 // pred_check
        %p256 = pneg %p143
      $region14: #{unet_encoding_block.2} parent=11 // pred_check_branch
        %258 = sbr.rel (%p256) target = $region16
      $region15: #{unet_encoding_block.2} parent=11 // pred_region
        _
      $region16: #{unet_encoding_block.2} parent=11 // pred_fallthru
        _
      // Predicated region
      $region17: #{unet_encoding_block.2} parent=11 // pred_check
        %p259 = pneg %p164
      $region18: #{unet_encoding_block.2} parent=11 // pred_check_branch
        %261 = sbr.rel (%p259) target = $region20
      $region19: #{unet_encoding_block.2} parent=11 // pred_region
        _
      $region20: #{unet_encoding_block.2} parent=11 // pred_fallthru
        _
      // Predicated region
      $region21: #{unet_encoding_block.2} parent=11 // pred_check
        %p262 = pneg %p185
      $region22: #{unet_encoding_block.2} parent=11 // pred_check_branch
        %264 = sbr.rel (%p262) target = $region24
      $region23: #{unet_encoding_block.2} parent=11 // pred_region
        _
      $region24: #{unet_encoding_block.2} parent=11 // pred_fallthru
        _
    $region12: #{unet_encoding_block.2} parent=5 // pred_fallthru
      _
    %p265 = scmp.lt.s32.totalorder %s14, 4
    // Predicated region
    $region25: #{unet_encoding_block.2} parent=5 // pred_check
      %p266 = pneg %p265
    $region26: #{unet_encoding_block.2} parent=5 // pred_check_branch
      %268 = sbr.rel (%p266) target = $region28
    $region27: #{unet_encoding_block.2} parent=5 // pred_region
      // Predicated region
      $region29: #{unet_encoding_block.2} parent=27 // pred_check
        %p269 = pneg %p48
      $region30: #{unet_encoding_block.2} parent=27 // pred_check_branch
        %271 = sbr.rel (%p269) target = $region32
      $region31: #{unet_encoding_block.2} parent=27 // pred_region
        %p272 = scmp.lt.s32.totalorder %s21, 1
        %s273 = scalar_select %p272, %s21, 1
        %p274 = scmp.lt.s32.totalorder %s22, 1
        %s275 = scalar_select %p274, %s22, 1
        %s276 = smul.addr %s273, 2
        %s277 = sadd.s32 %s275, %s276
        %s278 = smul.addr %s277, 8
        %s279 = scalar_lea.vmem %s0, %s278
      $region32: #{unet_encoding_block.2} parent=27 // pred_fallthru
        _
      // Predicated region
      $region33: #{unet_encoding_block.2} parent=27 // pred_check
        %p280 = pneg %p82
      $region34: #{unet_encoding_block.2} parent=27 // pred_check_branch
        %282 = sbr.rel (%p280) target = $region36
      $region35: #{unet_encoding_block.2} parent=27 // pred_region
        %s283 = ssub.s32 %s22, 1
        %p284 = scmp.gt.s32.totalorder %s283, 0
        %s285 = scalar_select %p284, %s283, 0
        %p286 = scmp.lt.s32.totalorder %s21, 1
        %s287 = scalar_select %p286, %s21, 1
        %p288 = scmp.lt.s32.totalorder %s285, 1
        %s289 = scalar_select %p288, %s285, 1
        %s290 = smul.addr %s287, 2
        %s291 = sadd.s32 %s289, %s290
        %s292 = smul.addr %s291, 8
        %s293 = scalar_lea.vmem %s1, %s292
        %s294 = ssub.s32 %s22, 1
        %p295 = scmp.gt.s32.totalorder %s294, 0
        %s296 = scalar_select %p295, %s294, 0
      $region36: #{unet_encoding_block.2} parent=27 // pred_fallthru
        _
      // Predicated region
      $region37: #{unet_encoding_block.2} parent=27 // pred_check
        %p297 = pneg %p116
      $region38: #{unet_encoding_block.2} parent=27 // pred_check_branch
        %299 = sbr.rel (%p297) target = $region40
      $region39: #{unet_encoding_block.2} parent=27 // pred_region
        %s300 = sadd.s32 %s22, 1
        %p301 = scmp.lt.s32.totalorder %s300, 1
        %s302 = scalar_select %p301, %s300, 1
        %p303 = scmp.lt.s32.totalorder %s21, 1
        %s304 = scalar_select %p303, %s21, 1
        %p305 = scmp.lt.s32.totalorder %s302, 1
        %s306 = scalar_select %p305, %s302, 1
        %s307 = smul.addr %s304, 2
        %s308 = sadd.s32 %s306, %s307
        %s309 = smul.addr %s308, 8
        %s310 = scalar_lea.vmem %s2, %s309
        %s311 = sadd.s32 %s22, 1
        %p312 = scmp.lt.s32.totalorder %s311, 1
        %s313 = scalar_select %p312, %s311, 1
      $region40: #{unet_encoding_block.2} parent=27 // pred_fallthru
        _
    $region28: #{unet_encoding_block.2} parent=5 // pred_fallthru
      _
    %p314 = scmp.le.s32.totalorder 1, %s14
    %p315 = scmp.lt.s32.totalorder %s14, 5
    %p316 = pnand %p314, %p315
    %p317 = pneg %p316
    // Predicated region
    $region41: #{unet_encoding_block.2} parent=5 // pred_check
      _
    $region42: #{unet_encoding_block.2} parent=5 // pred_check_branch
      %319 = sbr.rel (%p316) target = $region44
    $region43: #{unet_encoding_block.2} parent=5 // pred_region
      %s320 = ssub.s32 %s14, 1
      %p321 = scmp.lt.s32.totalorder %s23, 1
      %s322 = scalar_select %p321, %s23, 1
      %p323 = scmp.lt.s32.totalorder %s24, 1
      %s324 = scalar_select %p323, %s24, 1
      %s325 = smul.addr %s322, 2
      %s326 = sadd.s32 %s324, %s325
      %s327 = smul.addr %s326, 8
      %s328 = scalar_lea.vmem %s0, %s327
      %p329 = pneg %p54
      %p330 = pneg %p51
      %s331 = ssub.s32 %s24, 1
      %p332 = scmp.gt.s32.totalorder %s331, 0
      %s333 = scalar_select %p332, %s331, 0
      %p334 = scmp.lt.s32.totalorder %s23, 1
      %s335 = scalar_select %p334, %s23, 1
      %p336 = scmp.lt.s32.totalorder %s333, 1
      %s337 = scalar_select %p336, %s333, 1
      %s338 = smul.addr %s335, 2
      %s339 = sadd.s32 %s337, %s338
      %s340 = smul.addr %s339, 8
      %s341 = scalar_lea.vmem %s1, %s340
      %p342 = pneg %p88
      %p343 = pneg %p85
      %s344 = sadd.s32 %s24, 1
      %p345 = scmp.lt.s32.totalorder %s344, 1
      %s346 = scalar_select %p345, %s344, 1
      %p347 = scmp.lt.s32.totalorder %s23, 1
      %s348 = scalar_select %p347, %s23, 1
      %p349 = scmp.lt.s32.totalorder %s346, 1
      %s350 = scalar_select %p349, %s346, 1
      %s351 = smul.addr %s348, 2
      %s352 = sadd.s32 %s350, %s351
      %s353 = smul.addr %s352, 8
      %s354 = scalar_lea.vmem %s2, %s353
      %p355 = pneg %p122
      %p356 = pneg %p119
      %p357 = pneg %p143
      %p358 = pneg %p140
      %p359 = pneg %p164
      %p360 = pneg %p161
      %p361 = pneg %p185
      %p362 = pneg %p182
      %p363 = pneg %p213
      %p364 = pneg %p210
      %p365 = scmp.lt.s32.totalorder %s23, 1
      %s366 = scalar_select %p365, %s23, 1
      %p367 = scmp.lt.s32.totalorder %s24, 1
      %s368 = scalar_select %p367, %s24, 1
      %s369 = smul.addr %s366, 2
      %s370 = sadd.s32 %s368, %s369
      %s371 = smul.addr %s370, 4
      %s372 = scalar_lea.vmem %s6, %s371
      %p373 = pneg %p241
      %p374 = pneg %p238
      %p375 = scmp.lt.s32.totalorder %s23, 1
      %s376 = scalar_select %p375, %s23, 1
      %p377 = scmp.lt.s32.totalorder %s24, 1
      %s378 = scalar_select %p377, %s24, 1
      %s379 = smul.addr %s376, 2
      %s380 = sadd.s32 %s378, %s379
      %s381 = smul.addr %s380, 2
      %s382 = scalar_lea.vmem %s7, %s381
      %p383 = scmp.lt.s32.totalorder %s23, 1
      %s384 = scalar_select %p383, %s23, 1
      %p385 = scmp.lt.s32.totalorder %s24, 1
      %s386 = scalar_select %p385, %s24, 1
      %s387 = smul.addr %s384, 2
      %s388 = sadd.s32 %s386, %s387
      %s389 = smul.addr %s388, 8
      %s390 = scalar_lea.vmem %s0, %s389
      %s391 = ssub.s32 %s24, 1
      %p392 = scmp.gt.s32.totalorder %s391, 0
      %s393 = scalar_select %p392, %s391, 0
      %p394 = scmp.lt.s32.totalorder %s23, 1
      %s395 = scalar_select %p394, %s23, 1
      %p396 = scmp.lt.s32.totalorder %s393, 1
      %s397 = scalar_select %p396, %s393, 1
      %s398 = smul.addr %s395, 2
      %s399 = sadd.s32 %s397, %s398
      %s400 = smul.addr %s399, 8
      %s401 = scalar_lea.vmem %s1, %s400
      %s402 = ssub.s32 %s24, 1
      %p403 = scmp.gt.s32.totalorder %s402, 0
      %s404 = scalar_select %p403, %s402, 0
      %s405 = sadd.s32 %s24, 1
      %p406 = scmp.lt.s32.totalorder %s405, 1
      %s407 = scalar_select %p406, %s405, 1
      %p408 = scmp.lt.s32.totalorder %s23, 1
      %s409 = scalar_select %p408, %s23, 1
      %p410 = scmp.lt.s32.totalorder %s407, 1
      %s411 = scalar_select %p410, %s407, 1
      %s412 = smul.addr %s409, 2
      %s413 = sadd.s32 %s411, %s412
      %s414 = smul.addr %s413, 8
      %s415 = scalar_lea.vmem %s2, %s414
      %s416 = sadd.s32 %s24, 1
      %p417 = scmp.lt.s32.totalorder %s416, 1
      %s418 = scalar_select %p417, %s416, 1
      %p419 = scmp.lt.s32.totalorder %s23, 1
      %s420 = scalar_select %p419, %s23, 1
      %p421 = scmp.lt.s32.totalorder %s24, 1
      %s422 = scalar_select %p421, %s24, 1
      %s423 = smul.addr %s420, 2
      %s424 = sadd.s32 %s422, %s423
      %s425 = smul.addr %s424, 4
      %s426 = scalar_lea.vmem %s6, %s425
      %p427 = scmp.lt.s32.totalorder %s23, 1
      %s428 = scalar_select %p427, %s23, 1
      %p429 = scmp.lt.s32.totalorder %s24, 1
      %s430 = scalar_select %p429, %s24, 1
      %s431 = smul.addr %s428, 2
      %s432 = sadd.s32 %s430, %s431
      %s433 = smul.addr %s432, 2
      %s434 = scalar_lea.vmem %s7, %s433
      %v436 = vld [vmem:[%s390] sm:$0xff]
      %v437 = vld [vmem:[%s401] sm:$0xff]
      %v438 = vld [vmem:[%s415] sm:$0xff]
      %p439 = scmp.gt.s32.totalorder %s24, 0
      %s440 = scalar_select %p439, 1.0, 0.0
      %v441 = vstv %s440
      %v442 = vmul.f32 %v437, %v441
      %p443 = scmp.lt.s32.totalorder %s24, 1
      %s444 = scalar_select %p443, 1.0, 0.0
      %v445 = vstv %s444
      %v446 = vmul.f32 %v438, %v445
      %v448 = vrot.slane %v442, 7
      %v451 = vrot.slane %v436, 7
      %v454 = vrot.slane %v446, 7
      %vm456 = vcmask 1040384
      %v457 = vsel %vm456, %v448, %v451
      %v458 = vsel %vm456, %v451, %v454
      %vm461 = vcmask 1046528
      %v462 = vrot.slane %v457, 1
      %v463 = vrot.slane %v458, 1
      %v464 = vsel %vm461, %v462, %v463
      %465 = vrot.lane.b32.xlu0 %v464, 64
      %v466 = vpop.permute.xlu0 %465
      %vm468 = vcmask 1045504
      %v469 = vrot.slane %v457, 2
      %v470 = vrot.slane %v458, 2
      %v471 = vsel %vm468, %v469, %v470
      %vm473 = vcmask 523264
      %v474 = vsel %vm473, %v457, %v466
      %v475 = vpack.c.bf16 %v474, %v474
      %v476 = vpack.c.bf16 %v471, %v471
      %v477 = vld [vmem:[%s3] sm:$0xf]
      %v478 = vld [vmem:[%s3 + $0x4] sm:$0xf]
      %v479 = vld [vmem:[%s3 + $0x8] sm:$0xf]
      %v480 = vld [vmem:[%s3 + $0xc] sm:$0xf]
      %v481 = vld [vmem:[%s3 + $0x10] sm:$0xf]
      %v482 = vld [vmem:[%s3 + $0x14] sm:$0xf]
      %v483 = vld [vmem:[%s3 + $0x18] sm:$0xf]
      %v484 = vld [vmem:[%s3 + $0x1c] sm:$0xf]
      %v485 = vld [vmem:[%s3 + $0x20] sm:$0xf]
      %v486 = vld [vmem:[%s3 + $0x24] sm:$0xf]
      %v487 = vld [vmem:[%s3 + $0x28] sm:$0xf]
      %v488 = vld [vmem:[%s3 + $0x2c] sm:$0xf]
      %v489 = vld [vmem:[%s3 + $0x30] sm:$0xf]
      %v490 = vld [vmem:[%s3 + $0x34] sm:$0xf]
      %v491 = vld [vmem:[%s3 + $0x38] sm:$0xf]
      %v492 = vld [vmem:[%s3 + $0x3c] sm:$0xf]
      %v493 = vld [vmem:[%s3 + $0x40] sm:$0xf]
      %v494 = vld [vmem:[%s3 + $0x44] sm:$0xf]
      %v495 = vld [vmem:[%s3 + $0x48] sm:$0xf]
      %v496 = vld [vmem:[%s3 + $0x4c] sm:$0xf]
      %v497 = vld [vmem:[%s3 + $0x50] sm:$0xf]
      %v498 = vld [vmem:[%s3 + $0x54] sm:$0xf]
      %v499 = vld [vmem:[%s3 + $0x58] sm:$0xf]
      %v500 = vld [vmem:[%s3 + $0x5c] sm:$0xf]
      %v525 = vunpack.c.l.b16 %v477
      %v526 = vunpack.c.l.b16 %v478
      %v527 = vunpack.c.l.b16 %v479
      %v528 = vunpack.c.l.b16 %v480
      %v529 = vunpack.c.l.b16 %v481
      %v530 = vunpack.c.l.b16 %v482
      %v531 = vunpack.c.l.b16 %v483
      %v532 = vunpack.c.l.b16 %v484
      %v533 = vunpack.c.l.b16 %v485
      %v534 = vunpack.c.l.b16 %v486
      %v535 = vunpack.c.l.b16 %v487
      %v536 = vunpack.c.l.b16 %v488
      %v537 = vunpack.c.l.b16 %v489
      %v538 = vunpack.c.l.b16 %v490
      %v539 = vunpack.c.l.b16 %v491
      %v540 = vunpack.c.l.b16 %v492
      %v541 = vunpack.c.l.b16 %v493
      %v542 = vunpack.c.l.b16 %v494
      %v543 = vunpack.c.l.b16 %v495
      %v544 = vunpack.c.l.b16 %v496
      %v545 = vunpack.c.l.b16 %v497
      %v546 = vunpack.c.l.b16 %v498
      %v547 = vunpack.c.l.b16 %v499
      %v548 = vunpack.c.l.b16 %v500
      %v549 = vpack.c.b16 %v526, %v525
      %v550 = vpack.c.b16 %v528, %v527
      %v551 = vpack.c.b16 %v530, %v529
      %v552 = vpack.c.b16 %v532, %v531
      %v553 = vpack.c.b16 %v534, %v533
      %v554 = vpack.c.b16 %v536, %v535
      %v555 = vpack.c.b16 %v538, %v537
      %v556 = vpack.c.b16 %v540, %v539
      %v557 = vpack.c.b16 %v542, %v541
      %v558 = vpack.c.b16 %v544, %v543
      %v559 = vpack.c.b16 %v546, %v545
      %v560 = vpack.c.b16 %v548, %v547
      %v574 = vsel %vm473, %v476, 0
      %576 = vmatprep.subr.bf16.mxu0 0
      %577 = vmatpush1.bf16.msra.mxu0 %v556
      %578 = vmatprep.subr.bf16.mxu0 0
      %579 = vmatpush1.bf16.msra.mxu0 %v555
      %580 = vmatprep.subr.bf16.mxu0 0
      %581 = vmatpush1.bf16.msra.mxu0 %v554
      %582 = vmatprep.subr.bf16.mxu0 0
      %583 = vmatpush1.bf16.msra.mxu0 %v553
      %584 = vmatprep.subr.bf16.mxu0 0
      %585 = vmatpush1.bf16.msra.mxu0 %v552
      %586 = vmatprep.subr.bf16.mxu0 0
      %587 = vmatpush1.bf16.msra.mxu0 %v551
      %588 = vmatprep.subr.bf16.mxu0 0
      %589 = vmatpush1.bf16.msra.mxu0 %v550
      %590 = vmatprep.subr.bf16.mxu0 0
      %591 = vmatpush1.bf16.msra.mxu0 %v549
      %592 = vmatprep.subr.bf16.mxu0 0
      %593 = vmatpush2.bf16.msra.mxu0 0
      %594 = vmatprep.subr.bf16.mxu0 0
      %595 = vmatpush2.bf16.msra.mxu0 0
      %596 = vmatprep.subr.bf16.mxu0 0
      %597 = vmatpush2.bf16.msra.mxu0 0
      %598 = vmatprep.subr.bf16.mxu0 0
      %599 = vmatpush2.bf16.msra.mxu0 0
      %600 = vmatprep.subr.bf16.mxu0 0
      %601 = vmatpush2.bf16.msra.mxu0 %v560
      %602 = vmatprep.subr.bf16.mxu0 0
      %603 = vmatpush2.bf16.msra.mxu0 %v559
      %604 = vmatprep.subr.bf16.mxu0 0
      %605 = vmatpush2.bf16.msra.mxu0 %v558
      %606 = vmatprep.subr.bf16.mxu0 0
      %607 = vmatpush2.bf16.msra.mxu0 %v557
      %608 = vmatprep.mubr.bf16.mxu0 %v574
      %609 = vmatmul.mubr.bf16.gmra.mxu0 %v475
      %v610 = vpop.f32.mrf.mxu0
      %v611 = vadd.f32 0.0, %v610
      %v612 = vpop.f32.mrf.mxu0
      %v613 = vpop.f32.mrf.mxu0
      %v614 = vpop.f32.mrf.mxu0
      %615 = vdwg.mxu0
      %v616 = vrot.slane %v611, 4
      %v617 = vadd.f32 %v611, %v616
      %v618 = vrot.slane %v617, 2
      %v619 = vadd.f32 %v617, %v618
      %v620 = vrot.slane %v619, 1
      %v621 = vadd.f32 %v619, %v620
      %v622 = vmul.f32 %v611, %v611
      %v623 = vrot.slane %v622, 4
      %v624 = vadd.f32 %v622, %v623
      %v625 = vrot.slane %v624, 2
      %v626 = vadd.f32 %v624, %v625
      %v627 = vrot.slane %v626, 1
      %v628 = vadd.f32 %v626, %v627
      %v629 = vsel %vm456, %v621, %v628
      %630 = vst [vmem:[%s434] sm:$0x3] %v629
      %v631 = vpack.c.bf16 %v611, %v611
      %632 = vst [vmem:[%s426] sm:$0xf] %v631
      %p633 = scmp.lt.s32.totalorder %s23, 1
      %s634 = scalar_select %p633, %s23, 1
      %p635 = scmp.lt.s32.totalorder %s24, 1
      %s636 = scalar_select %p635, %s24, 1
      %s637 = smul.addr %s634, 2
      %s638 = sadd.s32 %s636, %s637
      %s639 = smul.addr %s638, 4
      %s640 = scalar_lea.vmem %s6, %s639
      %p641 = scmp.lt.s32.totalorder %s23, 1
      %s642 = scalar_select %p641, %s23, 1
      %p643 = scmp.lt.s32.totalorder %s24, 1
      %s644 = scalar_select %p643, %s24, 1
      %s645 = smul.addr %s642, 2
      %s646 = sadd.s32 %s644, %s645
      %s647 = smul.addr %s646, 2
      %s648 = scalar_lea.vmem %s7, %s647
      // Predicated region
      $region45: #{unet_encoding_block.2} parent=43 // pred_check
        %p649 = pneg %p210
      $region46: #{unet_encoding_block.2} parent=43 // pred_check_branch
        %651 = sbr.rel (%p649) target = $region48
      $region47: #{unet_encoding_block.2} parent=43 // pred_region
        _
      $region48: #{unet_encoding_block.2} parent=43 // pred_fallthru
        _
      // Predicated region
      $region49: #{unet_encoding_block.2} parent=43 // pred_check
        %p652 = pneg %p238
      $region50: #{unet_encoding_block.2} parent=43 // pred_check_branch
        %654 = sbr.rel (%p652) target = $region52
      $region51: #{unet_encoding_block.2} parent=43 // pred_region
        _
      $region52: #{unet_encoding_block.2} parent=43 // pred_fallthru
        _
    $region44: #{unet_encoding_block.2} parent=5 // pred_fallthru
      _
    %p655 = scmp.le.s32.totalorder 2, %s14
    // Predicated region
    $region53: #{unet_encoding_block.2} parent=5 // pred_check
      %p656 = pneg %p655
    $region54: #{unet_encoding_block.2} parent=5 // pred_check_branch
      %658 = sbr.rel (%p656) target = $region56
    $region55: #{unet_encoding_block.2} parent=5 // pred_region
      %s659 = ssub.s32 %s14, 2
      // Predicated region
      $region57: #{unet_encoding_block.2} parent=55 // pred_check
        %p660 = pneg %p216
      $region58: #{unet_encoding_block.2} parent=55 // pred_check_branch
        %662 = sbr.rel (%p660) target = $region60
      $region59: #{unet_encoding_block.2} parent=55 // pred_region
        %p663 = scmp.lt.s32.totalorder %s25, 1
        %s664 = scalar_select %p663, %s25, 1
        %p665 = scmp.lt.s32.totalorder %s26, 1
        %s666 = scalar_select %p665, %s26, 1
        %s667 = smul.addr %s664, 2
        %s668 = sadd.s32 %s666, %s667
        %s669 = smul.addr %s668, 4
        %s670 = scalar_lea.vmem %s6, %s669
      $region60: #{unet_encoding_block.2} parent=55 // pred_fallthru
        _
      // Predicated region
      $region61: #{unet_encoding_block.2} parent=55 // pred_check
        %p671 = pneg %p244
      $region62: #{unet_encoding_block.2} parent=55 // pred_check_branch
        %673 = sbr.rel (%p671) target = $region64
      $region63: #{unet_encoding_block.2} parent=55 // pred_region
        %p674 = scmp.lt.s32.totalorder %s25, 1
        %s675 = scalar_select %p674, %s25, 1
        %p676 = scmp.lt.s32.totalorder %s26, 1
        %s677 = scalar_select %p676, %s26, 1
        %s678 = smul.addr %s675, 2
        %s679 = sadd.s32 %s677, %s678
        %s680 = smul.addr %s679, 2
        %s681 = scalar_lea.vmem %s7, %s680
      $region64: #{unet_encoding_block.2} parent=55 // pred_fallthru
        _
    $region56: #{unet_encoding_block.2} parent=5 // pred_fallthru
      _
  $region6: #{unet_encoding_block.2} parent=0 // loop_footer
    %s18 = sadd.s32 1, %s14
  $region7: #{unet_encoding_block.2} parent=0 // loop_footer_branch
    %13 = sbr.rel target = $region3
  $region8: #{unet_encoding_block.2} parent=0 // loop_exit
    _

// kernel: tile.28
$region0: #{tile.28}
  #allocation0 [shape = 's32[1]{0}', space=sflag, size = 0x4, scoped, tag = 'scoped memory for tile.28']
  %s0 = inlined_call_operand.vmem [shape: f32[8], index: 0, kind: input, shape index: {}]
  %s1 = inlined_call_operand.vmem [shape: f32[16,8], index: 1, kind: output, shape index: {}]
  // Predicated region
  $region2: #{tile.28} parent=0 // pred_check
    _
  $region3: #{tile.28} parent=0 // pred_check_branch
    %3 = sbr.rel (0) target = $region5
  $region4: #{tile.28} parent=0 // pred_region
    _
  $region5: #{tile.28} parent=0 // pred_fallthru
    _
  %v4 = vld [vmem:[%s0] ss:$0 sm:$0xff]
  %5 = vst [vmem:[%s1] sm:$0xff] %v4
  %s6 = scalar_lea.vmem %s1, 8
  %7 = vst [vmem:[%s6] sm:$0xff] %v4

// kernel: tile.29
$region0: #{tile.29}
  %s0 = inlined_call_operand.vmem [shape: f32[16,8], index: 0, kind: input, shape index: {}]
  %s1 = inlined_call_operand.vmem [shape: f32[1,128], index: 1, kind: output, shape index: {}]
  $region1: #{tile.29} parent=0
    #allocation0 [shape = 'u8[4096]{0}', space=vmem, size = 0x1000, scoped, tag = 'scoped mem for output reshape']
    %v2 = vld [vmem:[%s0] sm:$0x1]
    %vm3 = vcmask 64512
    %4 = vst.msk [vmem:[#allocation0] sm:$0x1] %vm3, %v2
    %s5 = scalar_lea.vmem %s0, 15
    %v6 = vld [vmem:[%s5] sm:$0x1]
    %7 = vrot.lane.b32.xlu0 %v6, 120
    %v8 = vpop.permute.xlu0 %7
    %vm9 = vcmask 1048512
    %10 = vst.msk [vmem:[#allocation0] sm:$0x1] %vm9, %v8
    %s11 = scalar_lea.vmem %s0, 14
    %v12 = vld [vmem:[%s11] sm:$0x1]
    %13 = vrot.lane.b32.xlu0 %v12, 112
    %v14 = vpop.permute.xlu0 %13
    %vm15 = vcmask 982912
    %16 = vst.msk [vmem:[#allocation0] sm:$0x1] %vm15, %v14
    %s17 = scalar_lea.vmem %s0, 13
    %v18 = vld [vmem:[%s17] sm:$0x1]
    %19 = vrot.lane.b32.xlu0 %v18, 104
    %v20 = vpop.permute.xlu0 %19
    %vm21 = vcmask 917312
    %22 = vst.msk [vmem:[#allocation0] sm:$0x1] %vm21, %v20
    %s23 = scalar_lea.vmem %s0, 12
    %v24 = vld [vmem:[%s23] sm:$0x1]
    %25 = vrot.lane.b32.xlu0 %v24, 96
    %v26 = vpop.permute.xlu0 %25
    %vm27 = vcmask 851712
    %28 = vst.msk [vmem:[#allocation0] sm:$0x1] %vm27, %v26
    %s29 = scalar_lea.vmem %s0, 11
    %v30 = vld [vmem:[%s29] sm:$0x1]
    %31 = vrot.lane.b32.xlu0 %v30, 88
    %v32 = vpop.permute.xlu0 %31
    %vm33 = vcmask 786112
    %34 = vst.msk [vmem:[#allocation0] sm:$0x1] %vm33, %v32
    %s35 = scalar_lea.vmem %s0, 10
    %v36 = vld [vmem:[%s35] sm:$0x1]
    %37 = vrot.lane.b32.xlu0 %v36, 80
    %v38 = vpop.permute.xlu0 %37
    %vm39 = vcmask 720512
    %40 = vst.msk [vmem:[#allocation0] sm:$0x1] %vm39, %v38
    %s41 = scalar_lea.vmem %s0, 9
    %v42 = vld [vmem:[%s41] sm:$0x1]
    %43 = vrot.lane.b32.xlu0 %v42, 72
    %v44 = vpop.permute.xlu0 %43
    %vm45 = vcmask 654912
    %46 = vst.msk [vmem:[#allocation0] sm:$0x1] %vm45, %v44
    %s47 = scalar_lea.vmem %s0, 8
    %v48 = vld [vmem:[%s47] sm:$0x1]
    %49 = vrot.lane.b32.xlu0 %v48, 64
    %v50 = vpop.permute.xlu0 %49
    %vm51 = vcmask 589312
    %52 = vst.msk [vmem:[#allocation0] sm:$0x1] %vm51, %v50
    %s53 = scalar_lea.vmem %s0, 7
    %v54 = vld [vmem:[%s53] sm:$0x1]
    %55 = vrot.lane.b32.xlu0 %v54, 56
    %v56 = vpop.permute.xlu0 %55
    %vm57 = vcmask 523712
    %58 = vst.msk [vmem:[#allocation0] sm:$0x1] %vm57, %v56
    %s59 = scalar_lea.vmem %s0, 6
    %v60 = vld [vmem:[%s59] sm:$0x1]
    %61 = vrot.lane.b32.xlu0 %v60, 48
    %v62 = vpop.permute.xlu0 %61
    %vm63 = vcmask 458112
    %64 = vst.msk [vmem:[#allocation0] sm:$0x1] %vm63, %v62
    %s65 = scalar_lea.vmem %s0, 5
    %v66 = vld [vmem:[%s65] sm:$0x1]
    %67 = vrot.lane.b32.xlu0 %v66, 40
    %v68 = vpop.permute.xlu0 %67
    %vm69 = vcmask 392512
    %70 = vst.msk [vmem:[#allocation0] sm:$0x1] %vm69, %v68
    %s71 = scalar_lea.vmem %s0, 4
    %v72 = vld [vmem:[%s71] sm:$0x1]
    %73 = vrot.lane.b32.xlu0 %v72, 32
    %v74 = vpop.permute.xlu0 %73
    %vm75 = vcmask 326912
    %76 = vst.msk [vmem:[#allocation0] sm:$0x1] %vm75, %v74
    %s77 = scalar_lea.vmem %s0, 3
    %v78 = vld [vmem:[%s77] sm:$0x1]
    %79 = vrot.lane.b32.xlu0 %v78, 24
    %v80 = vpop.permute.xlu0 %79
    %vm81 = vcmask 261312
    %82 = vst.msk [vmem:[#allocation0] sm:$0x1] %vm81, %v80
    %s83 = scalar_lea.vmem %s0, 2
    %v84 = vld [vmem:[%s83] sm:$0x1]
    %85 = vrot.lane.b32.xlu0 %v84, 16
    %v86 = vpop.permute.xlu0 %85
    %vm87 = vcmask 195712
    %88 = vst.msk [vmem:[#allocation0] sm:$0x1] %vm87, %v86
    %s89 = scalar_lea.vmem %s0, 1
    %v90 = vld [vmem:[%s89] sm:$0x1]
    %91 = vrot.lane.b32.xlu0 %v90, 8
    %v92 = vpop.permute.xlu0 %91
    %vm93 = vcmask 130112
    %94 = vst.msk [vmem:[#allocation0] sm:$0x1] %vm93, %v92
    %s96 = sshll.u32 1, 1
    %s97 = ssub.s32 %s96, 1
    %v99 = vld [vmem:[#allocation0] sm:%s97]
    %s100 = sshll.u32 1, 1
    %s101 = ssub.s32 %s100, 1
    %102 = vst [vmem:[%s1] sm:%s101] %v99

// kernel: unet_encoding_block.3
$region0: #{unet_encoding_block.3}
  #allocation0 [shape = 'u32[]', space=smem, size = 0x4, offset = 0x4, fixed_abs, tag = 'smem constant byte address 0x4 - core index']
  #allocation1 [shape = 'u32[144,128]{1,0:T(1,128)}', space=vmem, size = 0x12000, scoped, tag = 'internal scratch']
  %s0 = inlined_call_operand.vmem [shape: bf16[2,16,128], index: 0, kind: input, shape index: {}, may-alias: {0,1,2}]
  %s1 = inlined_call_operand.vmem [shape: bf16[2,16,128], index: 1, kind: input, shape index: {}, may-alias: {0,1,2}]
  %s2 = inlined_call_operand.vmem [shape: bf16[2,16,128], index: 2, kind: input, shape index: {}, may-alias: {0,1,2}]
  %s3 = inlined_call_operand.vmem [shape: bf16[384,128], index: 3, kind: input, shape index: {}]
  %s4 = inlined_call_operand.vmem [shape: f32[1,128], index: 4, kind: input, shape index: {}]
  %s5 = inlined_call_operand.vmem [shape: f32[1,128], index: 5, kind: input, shape index: {}]
  %s6 = inlined_call_operand.vmem [shape: f32[2,16,128], index: 6, kind: output, shape index: {0}]
  %s7 = inlined_call_operand.vmem [shape: f32[2,2,2,128], index: 7, kind: output, shape index: {1}]
  %8 = xla_tuple %s6, %s7
  %s9 = sld [smem:[#allocation0]]
  $region65: #{unet_encoding_block.3} parent=0
    _
  %s11 = ssub.s32 1, %s9
  %s12 = scalar_select 0, %s11, %s9
  loop: start=0, step=1, limit=6
  $region2: #{unet_encoding_block.3} parent=0 // loop_pre_header
    _
  $region3: #{unet_encoding_block.3} parent=0 // loop_header
    %s14 = sphi 0, %s18
    %p15 = scmp.ge.s32.totalorder %s14, 6
    %s21 = sphi 0, %s33
    %s22 = sphi 0, %s29
    %s23 = sphi 0, %s21
    %s24 = sphi 0, %s22
    %s25 = sphi 0, %s23
    %s26 = sphi 0, %s24
    %s38 = sphi 0, %s40
    %s41 = sphi 0, %s38
    %s42 = sphi 0, %s41
    %s58 = sphi 0, %s42
    %s72 = sphi 0, %s74
    %s75 = sphi 0, %s72
    %s76 = sphi 0, %s75
    %s92 = sphi 0, %s76
    %s106 = sphi 0, %s108
    %s109 = sphi 0, %s106
    %s110 = sphi 0, %s109
    %s126 = sphi 0, %s110
    %s130 = sphi 0, %s130
    %s132 = sphi 0, %s130
    %s133 = sphi 0, %s132
    %s147 = sphi 0, %s133
    %s151 = sphi 0, %s151
    %s153 = sphi 0, %s151
    %s154 = sphi 0, %s153
    %s168 = sphi 0, %s154
    %s172 = sphi 0, %s172
    %s174 = sphi 0, %s172
    %s175 = sphi 0, %s174
    %s189 = sphi 0, %s175
    %s197 = sphi 0, %s199
    %s200 = sphi 0, %s197
    %s201 = sphi 0, %s200
    %s217 = sphi 0, %s201
    %s225 = sphi 0, %s227
    %s228 = sphi 0, %s225
    %s229 = sphi 0, %s228
    %s245 = sphi 0, %s229
  $region4: #{unet_encoding_block.3} parent=0 // loop_header_branch
    %17 = sbr.rel (%p15) target = $region8
  $region5: #{unet_encoding_block.3} parent=0 // loop_body
    %s19 = ssub.s32 %s14, 1
    %s20 = ssub.s32 %s14, 2
    %s27 = sadd.s32 1, %s22
    %p28 = scmp.ge.s32.totalorder %s27, 2
    %s29 = scalar_select %p28, 0, %s27
    %s30 = sadd.s32 1, %s21
    %s31 = scalar_select %p28, %s30, %s21
    %p32 = scmp.ge.s32.totalorder %s31, 2
    %s33 = scalar_select %p32, 0, %s31
    %s34 = ssub.s32 %s21, %s33
    %s35 = ssub.s32 %s22, %s29
    %s36 = sor.u32 %s34, %s35
    %p37 = scmp.eq.s32.totalorder %s36, 0
    %s39 = sadd.s32 %s38, 1
    %s40 = scalar_select %p37, %s38, %s39
    %p43 = pneg %p37
    %p44 = scmp.eq.s32.totalorder %s14, 3
    %p45 = por %p43, %p44
    %p46 = scmp.ne.s32.totalorder %s38, %s41
    %p47 = scmp.eq.s32.totalorder %s14, 0
    %p48 = por %p46, %p47
    %p49 = scmp.ne.s32.totalorder %s38, %s41
    %p50 = scmp.eq.s32.totalorder %s19, 3
    %p51 = por %p49, %p50
    %p52 = scmp.ne.s32.totalorder %s41, %s42
    %p53 = scmp.eq.s32.totalorder %s19, 0
    %p54 = por %p52, %p53
    %p55 = scmp.ne.s32.totalorder %s41, %s42
    %p56 = scmp.eq.s32.totalorder %s20, 3
    %p57 = por %p55, %p56
    %p59 = scmp.ne.s32.totalorder %s42, %s58
    %p60 = scmp.eq.s32.totalorder %s20, 0
    %p61 = por %p59, %p60
    %s62 = ssub.s32 %s22, 1
    %p63 = scmp.gt.s32.totalorder %s62, 0
    %s64 = scalar_select %p63, %s62, 0
    %s65 = ssub.s32 %s29, 1
    %p66 = scmp.gt.s32.totalorder %s65, 0
    %s67 = scalar_select %p66, %s65, 0
    %s68 = ssub.s32 %s21, %s33
    %s69 = ssub.s32 %s64, %s67
    %s70 = sor.u32 %s68, %s69
    %p71 = scmp.eq.s32.totalorder %s70, 0
    %s73 = sadd.s32 %s72, 1
    %s74 = scalar_select %p71, %s72, %s73
    %p77 = pneg %p71
    %p78 = scmp.eq.s32.totalorder %s14, 3
    %p79 = por %p77, %p78
    %p80 = scmp.ne.s32.totalorder %s72, %s75
    %p81 = scmp.eq.s32.totalorder %s14, 0
    %p82 = por %p80, %p81
    %p83 = scmp.ne.s32.totalorder %s72, %s75
    %p84 = scmp.eq.s32.totalorder %s19, 3
    %p85 = por %p83, %p84
    %p86 = scmp.ne.s32.totalorder %s75, %s76
    %p87 = scmp.eq.s32.totalorder %s19, 0
    %p88 = por %p86, %p87
    %p89 = scmp.ne.s32.totalorder %s75, %s76
    %p90 = scmp.eq.s32.totalorder %s20, 3
    %p91 = por %p89, %p90
    %p93 = scmp.ne.s32.totalorder %s76, %s92
    %p94 = scmp.eq.s32.totalorder %s20, 0
    %p95 = por %p93, %p94
    %s96 = sadd.s32 %s22, 1
    %p97 = scmp.lt.s32.totalorder %s96, 1
    %s98 = scalar_select %p97, %s96, 1
    %s99 = sadd.s32 %s29, 1
    %p100 = scmp.lt.s32.totalorder %s99, 1
    %s101 = scalar_select %p100, %s99, 1
    %s102 = ssub.s32 %s21, %s33
    %s103 = ssub.s32 %s98, %s101
    %s104 = sor.u32 %s102, %s103
    %p105 = scmp.eq.s32.totalorder %s104, 0
    %s107 = sadd.s32 %s106, 1
    %s108 = scalar_select %p105, %s106, %s107
    %p111 = pneg %p105
    %p112 = scmp.eq.s32.totalorder %s14, 3
    %p113 = por %p111, %p112
    %p114 = scmp.ne.s32.totalorder %s106, %s109
    %p115 = scmp.eq.s32.totalorder %s14, 0
    %p116 = por %p114, %p115
    %p117 = scmp.ne.s32.totalorder %s106, %s109
    %p118 = scmp.eq.s32.totalorder %s19, 3
    %p119 = por %p117, %p118
    %p120 = scmp.ne.s32.totalorder %s109, %s110
    %p121 = scmp.eq.s32.totalorder %s19, 0
    %p122 = por %p120, %p121
    %p123 = scmp.ne.s32.totalorder %s109, %s110
    %p124 = scmp.eq.s32.totalorder %s20, 3
    %p125 = por %p123, %p124
    %p127 = scmp.ne.s32.totalorder %s110, %s126
    %p128 = scmp.eq.s32.totalorder %s20, 0
    %p129 = por %p127, %p128
    %s131 = sadd.s32 %s130, 1
    %p134 = scmp.eq.s32.totalorder %s14, 3
    %p135 = scmp.ne.s32.totalorder %s130, %s132
    %p136 = scmp.eq.s32.totalorder %s14, 0
    %p137 = por %p135, %p136
    %p138 = scmp.ne.s32.totalorder %s130, %s132
    %p139 = scmp.eq.s32.totalorder %s19, 3
    %p140 = por %p138, %p139
    %p141 = scmp.ne.s32.totalorder %s132, %s133
    %p142 = scmp.eq.s32.totalorder %s19, 0
    %p143 = por %p141, %p142
    %p144 = scmp.ne.s32.totalorder %s132, %s133
    %p145 = scmp.eq.s32.totalorder %s20, 3
    %p146 = por %p144, %p145
    %p148 = scmp.ne.s32.totalorder %s133, %s147
    %p149 = scmp.eq.s32.totalorder %s20, 0
    %p150 = por %p148, %p149
    %s152 = sadd.s32 %s151, 1
    %p155 = scmp.eq.s32.totalorder %s14, 3
    %p156 = scmp.ne.s32.totalorder %s151, %s153
    %p157 = scmp.eq.s32.totalorder %s14, 0
    %p158 = por %p156, %p157
    %p159 = scmp.ne.s32.totalorder %s151, %s153
    %p160 = scmp.eq.s32.totalorder %s19, 3
    %p161 = por %p159, %p160
    %p162 = scmp.ne.s32.totalorder %s153, %s154
    %p163 = scmp.eq.s32.totalorder %s19, 0
    %p164 = por %p162, %p163
    %p165 = scmp.ne.s32.totalorder %s153, %s154
    %p166 = scmp.eq.s32.totalorder %s20, 3
    %p167 = por %p165, %p166
    %p169 = scmp.ne.s32.totalorder %s154, %s168
    %p170 = scmp.eq.s32.totalorder %s20, 0
    %p171 = por %p169, %p170
    %s173 = sadd.s32 %s172, 1
    %p176 = scmp.eq.s32.totalorder %s14, 3
    %p177 = scmp.ne.s32.totalorder %s172, %s174
    %p178 = scmp.eq.s32.totalorder %s14, 0
    %p179 = por %p177, %p178
    %p180 = scmp.ne.s32.totalorder %s172, %s174
    %p181 = scmp.eq.s32.totalorder %s19, 3
    %p182 = por %p180, %p181
    %p183 = scmp.ne.s32.totalorder %s174, %s175
    %p184 = scmp.eq.s32.totalorder %s19, 0
    %p185 = por %p183, %p184
    %p186 = scmp.ne.s32.totalorder %s174, %s175
    %p187 = scmp.eq.s32.totalorder %s20, 3
    %p188 = por %p186, %p187
    %p190 = scmp.ne.s32.totalorder %s175, %s189
    %p191 = scmp.eq.s32.totalorder %s20, 0
    %p192 = por %p190, %p191
    %s193 = ssub.s32 %s21, %s33
    %s194 = ssub.s32 %s22, %s29
    %s195 = sor.u32 %s193, %s194
    %p196 = scmp.eq.s32.totalorder %s195, 0
    %s198 = sadd.s32 %s197, 1
    %s199 = scalar_select %p196, %s197, %s198
    %p202 = pneg %p196
    %p203 = scmp.eq.s32.totalorder %s14, 3
    %p204 = por %p202, %p203
    %p205 = scmp.ne.s32.totalorder %s197, %s200
    %p206 = scmp.eq.s32.totalorder %s14, 0
    %p207 = por %p205, %p206
    %p208 = scmp.ne.s32.totalorder %s197, %s200
    %p209 = scmp.eq.s32.totalorder %s19, 3
    %p210 = por %p208, %p209
    %p211 = scmp.ne.s32.totalorder %s200, %s201
    %p212 = scmp.eq.s32.totalorder %s19, 0
    %p213 = por %p211, %p212
    %p214 = scmp.ne.s32.totalorder %s200, %s201
    %p215 = scmp.eq.s32.totalorder %s20, 3
    %p216 = por %p214, %p215
    %p218 = scmp.ne.s32.totalorder %s201, %s217
    %p219 = scmp.eq.s32.totalorder %s20, 0
    %p220 = por %p218, %p219
    %s221 = ssub.s32 %s21, %s33
    %s222 = ssub.s32 %s22, %s29
    %s223 = sor.u32 %s221, %s222
    %p224 = scmp.eq.s32.totalorder %s223, 0
    %s226 = sadd.s32 %s225, 1
    %s227 = scalar_select %p224, %s225, %s226
    %p230 = pneg %p224
    %p231 = scmp.eq.s32.totalorder %s14, 3
    %p232 = por %p230, %p231
    %p233 = scmp.ne.s32.totalorder %s225, %s228
    %p234 = scmp.eq.s32.totalorder %s14, 0
    %p235 = por %p233, %p234
    %p236 = scmp.ne.s32.totalorder %s225, %s228
    %p237 = scmp.eq.s32.totalorder %s19, 3
    %p238 = por %p236, %p237
    %p239 = scmp.ne.s32.totalorder %s228, %s229
    %p240 = scmp.eq.s32.totalorder %s19, 0
    %p241 = por %p239, %p240
    %p242 = scmp.ne.s32.totalorder %s228, %s229
    %p243 = scmp.eq.s32.totalorder %s20, 3
    %p244 = por %p242, %p243
    %p246 = scmp.ne.s32.totalorder %s229, %s245
    %p247 = scmp.eq.s32.totalorder %s20, 0
    %p248 = por %p246, %p247
    %p249 = scmp.le.s32.totalorder 1, %s14
    %p250 = scmp.lt.s32.totalorder %s14, 5
    %p251 = pnand %p249, %p250
    %p252 = pneg %p251
    // Predicated region
    $region9: #{unet_encoding_block.3} parent=5 // pred_check
      _
    $region10: #{unet_encoding_block.3} parent=5 // pred_check_branch
      %254 = sbr.rel (%p251) target = $region12
    $region11: #{unet_encoding_block.3} parent=5 // pred_region
      %s255 = ssub.s32 %s14, 1
      // Predicated region
      $region13: #{unet_encoding_block.3} parent=11 // pred_check
        %p256 = pneg %p143
      $region14: #{unet_encoding_block.3} parent=11 // pred_check_branch
        %258 = sbr.rel (%p256) target = $region16
      $region15: #{unet_encoding_block.3} parent=11 // pred_region
        _
      $region16: #{unet_encoding_block.3} parent=11 // pred_fallthru
        _
      // Predicated region
      $region17: #{unet_encoding_block.3} parent=11 // pred_check
        %p259 = pneg %p164
      $region18: #{unet_encoding_block.3} parent=11 // pred_check_branch
        %261 = sbr.rel (%p259) target = $region20
      $region19: #{unet_encoding_block.3} parent=11 // pred_region
        _
      $region20: #{unet_encoding_block.3} parent=11 // pred_fallthru
        _
      // Predicated region
      $region21: #{unet_encoding_block.3} parent=11 // pred_check
        %p262 = pneg %p185
      $region22: #{unet_encoding_block.3} parent=11 // pred_check_branch
        %264 = sbr.rel (%p262) target = $region24
      $region23: #{unet_encoding_block.3} parent=11 // pred_region
        _
      $region24: #{unet_encoding_block.3} parent=11 // pred_fallthru
        _
    $region12: #{unet_encoding_block.3} parent=5 // pred_fallthru
      _
    %p265 = scmp.lt.s32.totalorder %s14, 4
    // Predicated region
    $region25: #{unet_encoding_block.3} parent=5 // pred_check
      %p266 = pneg %p265
    $region26: #{unet_encoding_block.3} parent=5 // pred_check_branch
      %268 = sbr.rel (%p266) target = $region28
    $region27: #{unet_encoding_block.3} parent=5 // pred_region
      // Predicated region
      $region29: #{unet_encoding_block.3} parent=27 // pred_check
        %p269 = pneg %p48
      $region30: #{unet_encoding_block.3} parent=27 // pred_check_branch
        %271 = sbr.rel (%p269) target = $region32
      $region31: #{unet_encoding_block.3} parent=27 // pred_region
        %p272 = scmp.lt.s32.totalorder %s21, 1
        %s273 = scalar_select %p272, %s21, 1
        %p274 = scmp.lt.s32.totalorder %s22, 1
        %s275 = scalar_select %p274, %s22, 1
        %s276 = smul.addr %s273, 2
        %s277 = sadd.s32 %s275, %s276
        %s278 = smul.addr %s277, 4
        %s279 = scalar_lea.vmem %s0, %s278
      $region32: #{unet_encoding_block.3} parent=27 // pred_fallthru
        _
      // Predicated region
      $region33: #{unet_encoding_block.3} parent=27 // pred_check
        %p280 = pneg %p82
      $region34: #{unet_encoding_block.3} parent=27 // pred_check_branch
        %282 = sbr.rel (%p280) target = $region36
      $region35: #{unet_encoding_block.3} parent=27 // pred_region
        %s283 = ssub.s32 %s22, 1
        %p284 = scmp.gt.s32.totalorder %s283, 0
        %s285 = scalar_select %p284, %s283, 0
        %p286 = scmp.lt.s32.totalorder %s21, 1
        %s287 = scalar_select %p286, %s21, 1
        %p288 = scmp.lt.s32.totalorder %s285, 1
        %s289 = scalar_select %p288, %s285, 1
        %s290 = smul.addr %s287, 2
        %s291 = sadd.s32 %s289, %s290
        %s292 = smul.addr %s291, 4
        %s293 = scalar_lea.vmem %s1, %s292
        %s294 = ssub.s32 %s22, 1
        %p295 = scmp.gt.s32.totalorder %s294, 0
        %s296 = scalar_select %p295, %s294, 0
      $region36: #{unet_encoding_block.3} parent=27 // pred_fallthru
        _
      // Predicated region
      $region37: #{unet_encoding_block.3} parent=27 // pred_check
        %p297 = pneg %p116
      $region38: #{unet_encoding_block.3} parent=27 // pred_check_branch
        %299 = sbr.rel (%p297) target = $region40
      $region39: #{unet_encoding_block.3} parent=27 // pred_region
        %s300 = sadd.s32 %s22, 1
        %p301 = scmp.lt.s32.totalorder %s300, 1
        %s302 = scalar_select %p301, %s300, 1
        %p303 = scmp.lt.s32.totalorder %s21, 1
        %s304 = scalar_select %p303, %s21, 1
        %p305 = scmp.lt.s32.totalorder %s302, 1
        %s306 = scalar_select %p305, %s302, 1
        %s307 = smul.addr %s304, 2
        %s308 = sadd.s32 %s306, %s307
        %s309 = smul.addr %s308, 4
        %s310 = scalar_lea.vmem %s2, %s309
        %s311 = sadd.s32 %s22, 1
        %p312 = scmp.lt.s32.totalorder %s311, 1
        %s313 = scalar_select %p312, %s311, 1
      $region40: #{unet_encoding_block.3} parent=27 // pred_fallthru
        _
    $region28: #{unet_encoding_block.3} parent=5 // pred_fallthru
      _
    %p314 = scmp.le.s32.totalorder 1, %s14
    %p315 = scmp.lt.s32.totalorder %s14, 5
    %p316 = pnand %p314, %p315
    %p317 = pneg %p316
    // Predicated region
    $region41: #{unet_encoding_block.3} parent=5 // pred_check
      _
    $region42: #{unet_encoding_block.3} parent=5 // pred_check_branch
      %319 = sbr.rel (%p316) target = $region44
    $region43: #{unet_encoding_block.3} parent=5 // pred_region
      %s320 = ssub.s32 %s14, 1
      %p321 = scmp.lt.s32.totalorder %s23, 1
      %s322 = scalar_select %p321, %s23, 1
      %p323 = scmp.lt.s32.totalorder %s24, 1
      %s324 = scalar_select %p323, %s24, 1
      %s325 = smul.addr %s322, 2
      %s326 = sadd.s32 %s324, %s325
      %s327 = smul.addr %s326, 4
      %s328 = scalar_lea.vmem %s0, %s327
      %p329 = pneg %p54
      %p330 = pneg %p51
      %s331 = ssub.s32 %s24, 1
      %p332 = scmp.gt.s32.totalorder %s331, 0
      %s333 = scalar_select %p332, %s331, 0
      %p334 = scmp.lt.s32.totalorder %s23, 1
      %s335 = scalar_select %p334, %s23, 1
      %p336 = scmp.lt.s32.totalorder %s333, 1
      %s337 = scalar_select %p336, %s333, 1
      %s338 = smul.addr %s335, 2
      %s339 = sadd.s32 %s337, %s338
      %s340 = smul.addr %s339, 4
      %s341 = scalar_lea.vmem %s1, %s340
      %p342 = pneg %p88
      %p343 = pneg %p85
      %s344 = sadd.s32 %s24, 1
      %p345 = scmp.lt.s32.totalorder %s344, 1
      %s346 = scalar_select %p345, %s344, 1
      %p347 = scmp.lt.s32.totalorder %s23, 1
      %s348 = scalar_select %p347, %s23, 1
      %p349 = scmp.lt.s32.totalorder %s346, 1
      %s350 = scalar_select %p349, %s346, 1
      %s351 = smul.addr %s348, 2
      %s352 = sadd.s32 %s350, %s351
      %s353 = smul.addr %s352, 4
      %s354 = scalar_lea.vmem %s2, %s353
      %p355 = pneg %p122
      %p356 = pneg %p119
      %p357 = pneg %p143
      %p358 = pneg %p140
      %p359 = pneg %p164
      %p360 = pneg %p161
      %p361 = pneg %p185
      %p362 = pneg %p182
      %p363 = pneg %p213
      %p364 = pneg %p210
      %p365 = scmp.lt.s32.totalorder %s23, 1
      %s366 = scalar_select %p365, %s23, 1
      %p367 = scmp.lt.s32.totalorder %s24, 1
      %s368 = scalar_select %p367, %s24, 1
      %s369 = smul.addr %s366, 2
      %s370 = sadd.s32 %s368, %s369
      %s371 = smul.addr %s370, 8
      %s372 = scalar_lea.vmem %s6, %s371
      %p373 = pneg %p241
      %p374 = pneg %p238
      %p375 = scmp.lt.s32.totalorder %s23, 1
      %s376 = scalar_select %p375, %s23, 1
      %p377 = scmp.lt.s32.totalorder %s24, 1
      %s378 = scalar_select %p377, %s24, 1
      %s379 = smul.addr %s376, 2
      %s380 = sadd.s32 %s378, %s379
      %s381 = smul.addr %s380, 2
      %s382 = scalar_lea.vmem %s7, %s381
      %p383 = scmp.lt.s32.totalorder %s23, 1
      %s384 = scalar_select %p383, %s23, 1
      %p385 = scmp.lt.s32.totalorder %s24, 1
      %s386 = scalar_select %p385, %s24, 1
      %s387 = smul.addr %s384, 2
      %s388 = sadd.s32 %s386, %s387
      %s389 = smul.addr %s388, 4
      %s390 = scalar_lea.vmem %s0, %s389
      %s391 = ssub.s32 %s24, 1
      %p392 = scmp.gt.s32.totalorder %s391, 0
      %s393 = scalar_select %p392, %s391, 0
      %p394 = scmp.lt.s32.totalorder %s23, 1
      %s395 = scalar_select %p394, %s23, 1
      %p396 = scmp.lt.s32.totalorder %s393, 1
      %s397 = scalar_select %p396, %s393, 1
      %s398 = smul.addr %s395, 2
      %s399 = sadd.s32 %s397, %s398
      %s400 = smul.addr %s399, 4
      %s401 = scalar_lea.vmem %s1, %s400
      %s402 = ssub.s32 %s24, 1
      %p403 = scmp.gt.s32.totalorder %s402, 0
      %s404 = scalar_select %p403, %s402, 0
      %s405 = sadd.s32 %s24, 1
      %p406 = scmp.lt.s32.totalorder %s405, 1
      %s407 = scalar_select %p406, %s405, 1
      %p408 = scmp.lt.s32.totalorder %s23, 1
      %s409 = scalar_select %p408, %s23, 1
      %p410 = scmp.lt.s32.totalorder %s407, 1
      %s411 = scalar_select %p410, %s407, 1
      %s412 = smul.addr %s409, 2
      %s413 = sadd.s32 %s411, %s412
      %s414 = smul.addr %s413, 4
      %s415 = scalar_lea.vmem %s2, %s414
      %s416 = sadd.s32 %s24, 1
      %p417 = scmp.lt.s32.totalorder %s416, 1
      %s418 = scalar_select %p417, %s416, 1
      %p419 = scmp.lt.s32.totalorder %s23, 1
      %s420 = scalar_select %p419, %s23, 1
      %p421 = scmp.lt.s32.totalorder %s24, 1
      %s422 = scalar_select %p421, %s24, 1
      %s423 = smul.addr %s420, 2
      %s424 = sadd.s32 %s422, %s423
      %s425 = smul.addr %s424, 8
      %s426 = scalar_lea.vmem %s6, %s425
      %p427 = scmp.lt.s32.totalorder %s23, 1
      %s428 = scalar_select %p427, %s23, 1
      %p429 = scmp.lt.s32.totalorder %s24, 1
      %s430 = scalar_select %p429, %s24, 1
      %s431 = smul.addr %s428, 2
      %s432 = sadd.s32 %s430, %s431
      %s433 = smul.addr %s432, 2
      %s434 = scalar_lea.vmem %s7, %s433
      %v436 = vld [vmem:[%s390] sm:$0xf]
      %v437 = vunpack.c.l.bf16 %v436
      %v438 = vld [vmem:[%s4] sm:$0x1]
      %v440 = vlaneseq
      %v441 = vshrl.u32 %v440, 7
      %v442 = vsub.s32 0, %v441
      %v443 = vrot.slane %v438, %v442
      %v445 = vmul.f32 %v437, %v443
      %v446 = vld [vmem:[%s5] sm:$0x1]
      %v448 = vlaneseq
      %v449 = vshrl.u32 %v448, 7
      %v450 = vsub.s32 0, %v449
      %v451 = vrot.slane %v446, %v450
      %v453 = vadd.f32 %v445, %v451
      %v454 = vmax.f32 %v453, 0.0
      %v455 = vld [vmem:[%s401] sm:$0xf]
      %v456 = vunpack.c.l.bf16 %v455
      %v457 = vmul.f32 %v456, %v443
      %v458 = vadd.f32 %v457, %v451
      %v459 = vmax.f32 %v458, 0.0
      %v460 = vld [vmem:[%s415] sm:$0xf]
      %v461 = vunpack.c.l.bf16 %v460
      %v462 = vmul.f32 %v461, %v438
      %v463 = vadd.f32 %v462, %v446
      %v464 = vmax.f32 %v463, 0.0
      %p465 = scmp.gt.s32.totalorder %s24, 0
      %s466 = scalar_select %p465, 1.0, 0.0
      %v467 = vstv %s466
      %v468 = vmul.f32 %v459, %v467
      %p469 = scmp.lt.s32.totalorder %s24, 1
      %s470 = scalar_select %p469, 1.0, 0.0
      %v471 = vstv %s470
      %v472 = vmul.f32 %v464, %v471
      %v474 = vrot.slane %v468, 7
      %v477 = vrot.slane %v454, 7
      %v480 = vrot.slane %v472, 7
      %vm482 = vcmask 1040384
      %v483 = vsel %vm482, %v474, %v477
      %v484 = vsel %vm482, %v477, %v480
      %vm487 = vcmask 1046528
      %v488 = vrot.slane %v483, 1
      %v489 = vrot.slane %v484, 1
      %v490 = vsel %vm487, %v488, %v489
      %vm492 = vcmask 1045504
      %v493 = vrot.slane %v483, 2
      %v494 = vrot.slane %v484, 2
      %v495 = vsel %vm492, %v493, %v494
      %v497 = vpack.c.bf16 %v483, %v483
      %v498 = vpack.c.bf16 %v490, %v490
      %v499 = vpack.c.bf16 %v495, %v495
      %v500 = vld [vmem:[%s3] sm:$0xf]
      %v501 = vld [vmem:[%s3 + $0x4] sm:$0xf]
      %v502 = vld [vmem:[%s3 + $0x8] sm:$0xf]
      %v503 = vld [vmem:[%s3 + $0xc] sm:$0xf]
      %v504 = vld [vmem:[%s3 + $0x10] sm:$0xf]
      %v505 = vld [vmem:[%s3 + $0x14] sm:$0xf]
      %v506 = vld [vmem:[%s3 + $0x18] sm:$0xf]
      %v507 = vld [vmem:[%s3 + $0x1c] sm:$0xf]
      %v508 = vld [vmem:[%s3 + $0x20] sm:$0xf]
      %v509 = vld [vmem:[%s3 + $0x24] sm:$0xf]
      %v510 = vld [vmem:[%s3 + $0x28] sm:$0xf]
      %v511 = vld [vmem:[%s3 + $0x2c] sm:$0xf]
      %v512 = vld [vmem:[%s3 + $0x30] sm:$0xf]
      %v513 = vld [vmem:[%s3 + $0x34] sm:$0xf]
      %v514 = vld [vmem:[%s3 + $0x38] sm:$0xf]
      %v515 = vld [vmem:[%s3 + $0x3c] sm:$0xf]
      %v516 = vld [vmem:[%s3 + $0x40] sm:$0xf]
      %v517 = vld [vmem:[%s3 + $0x44] sm:$0xf]
      %v518 = vld [vmem:[%s3 + $0x48] sm:$0xf]
      %v519 = vld [vmem:[%s3 + $0x4c] sm:$0xf]
      %v520 = vld [vmem:[%s3 + $0x50] sm:$0xf]
      %v521 = vld [vmem:[%s3 + $0x54] sm:$0xf]
      %v522 = vld [vmem:[%s3 + $0x58] sm:$0xf]
      %v523 = vld [vmem:[%s3 + $0x5c] sm:$0xf]
      %v524 = vld [vmem:[%s3 + $0x60] sm:$0xf]
      %v525 = vld [vmem:[%s3 + $0x64] sm:$0xf]
      %v526 = vld [vmem:[%s3 + $0x68] sm:$0xf]
      %v527 = vld [vmem:[%s3 + $0x6c] sm:$0xf]
      %v528 = vld [vmem:[%s3 + $0x70] sm:$0xf]
      %v529 = vld [vmem:[%s3 + $0x74] sm:$0xf]
      %v530 = vld [vmem:[%s3 + $0x78] sm:$0xf]
      %v531 = vld [vmem:[%s3 + $0x7c] sm:$0xf]
      %v532 = vld [vmem:[%s3 + $0x80] sm:$0xf]
      %v533 = vld [vmem:[%s3 + $0x84] sm:$0xf]
      %v534 = vld [vmem:[%s3 + $0x88] sm:$0xf]
      %v535 = vld [vmem:[%s3 + $0x8c] sm:$0xf]
      %v536 = vld [vmem:[%s3 + $0x90] sm:$0xf]
      %v537 = vld [vmem:[%s3 + $0x94] sm:$0xf]
      %v538 = vld [vmem:[%s3 + $0x98] sm:$0xf]
      %v539 = vld [vmem:[%s3 + $0x9c] sm:$0xf]
      %v540 = vld [vmem:[%s3 + $0xa0] sm:$0xf]
      %v541 = vld [vmem:[%s3 + $0xa4] sm:$0xf]
      %v542 = vld [vmem:[%s3 + $0xa8] sm:$0xf]
      %v543 = vld [vmem:[%s3 + $0xac] sm:$0xf]
      %v544 = vld [vmem:[%s3 + $0xb0] sm:$0xf]
      %v545 = vld [vmem:[%s3 + $0xb4] sm:$0xf]
      %v546 = vld [vmem:[%s3 + $0xb8] sm:$0xf]
      %v547 = vld [vmem:[%s3 + $0xbc] sm:$0xf]
      %v596 = vunpack.c.l.b16 %v500
      %v597 = vunpack.c.l.b16 %v501
      %v598 = vunpack.c.l.b16 %v502
      %v599 = vunpack.c.l.b16 %v503
      %v600 = vunpack.c.l.b16 %v504
      %v601 = vunpack.c.l.b16 %v505
      %v602 = vunpack.c.l.b16 %v506
      %v603 = vunpack.c.l.b16 %v507
      %v604 = vunpack.c.l.b16 %v508
      %v605 = vunpack.c.l.b16 %v509
      %v606 = vunpack.c.l.b16 %v510
      %v607 = vunpack.c.l.b16 %v511
      %v608 = vunpack.c.l.b16 %v512
      %v609 = vunpack.c.l.b16 %v513
      %v610 = vunpack.c.l.b16 %v514
      %v611 = vunpack.c.l.b16 %v515
      %v612 = vunpack.c.l.b16 %v516
      %v613 = vunpack.c.l.b16 %v517
      %v614 = vunpack.c.l.b16 %v518
      %v615 = vunpack.c.l.b16 %v519
      %v616 = vunpack.c.l.b16 %v520
      %v617 = vunpack.c.l.b16 %v521
      %v618 = vunpack.c.l.b16 %v522
      %v619 = vunpack.c.l.b16 %v523
      %v620 = vunpack.c.l.b16 %v524
      %v621 = vunpack.c.l.b16 %v525
      %v622 = vunpack.c.l.b16 %v526
      %v623 = vunpack.c.l.b16 %v527
      %v624 = vunpack.c.l.b16 %v528
      %v625 = vunpack.c.l.b16 %v529
      %v626 = vunpack.c.l.b16 %v530
      %v627 = vunpack.c.l.b16 %v531
      %v628 = vunpack.c.l.b16 %v532
      %v629 = vunpack.c.l.b16 %v533
      %v630 = vunpack.c.l.b16 %v534
      %v631 = vunpack.c.l.b16 %v535
      %v632 = vunpack.c.l.b16 %v536
      %v633 = vunpack.c.l.b16 %v537
      %v634 = vunpack.c.l.b16 %v538
      %v635 = vunpack.c.l.b16 %v539
      %v636 = vunpack.c.l.b16 %v540
      %v637 = vunpack.c.l.b16 %v541
      %v638 = vunpack.c.l.b16 %v542
      %v639 = vunpack.c.l.b16 %v543
      %v640 = vunpack.c.l.b16 %v544
      %v641 = vunpack.c.l.b16 %v545
      %v642 = vunpack.c.l.b16 %v546
      %v643 = vunpack.c.l.b16 %v547
      %v644 = vpack.c.b16 %v597, %v596
      %v645 = vpack.c.b16 %v599, %v598
      %v646 = vpack.c.b16 %v601, %v600
      %v647 = vpack.c.b16 %v603, %v602
      %v648 = vpack.c.b16 %v605, %v604
      %v649 = vpack.c.b16 %v607, %v606
      %v650 = vpack.c.b16 %v609, %v608
      %v651 = vpack.c.b16 %v611, %v610
      %v652 = vpack.c.b16 %v613, %v612
      %v653 = vpack.c.b16 %v615, %v614
      %v654 = vpack.c.b16 %v617, %v616
      %v655 = vpack.c.b16 %v619, %v618
      %v656 = vpack.c.b16 %v621, %v620
      %v657 = vpack.c.b16 %v623, %v622
      %v658 = vpack.c.b16 %v625, %v624
      %v659 = vpack.c.b16 %v627, %v626
      %v660 = vpack.c.b16 %v629, %v628
      %v661 = vpack.c.b16 %v631, %v630
      %v662 = vpack.c.b16 %v633, %v632
      %v663 = vpack.c.b16 %v635, %v634
      %v664 = vpack.c.b16 %v637, %v636
      %v665 = vpack.c.b16 %v639, %v638
      %v666 = vpack.c.b16 %v641, %v640
      %v667 = vpack.c.b16 %v643, %v642
      %692 = vmatprep.subr.bf16.mxu0 0
      %693 = vmatpush1.bf16.msra.mxu0 %v651
      %694 = vmatprep.subr.bf16.mxu0 0
      %695 = vmatpush1.bf16.msra.mxu0 %v650
      %696 = vmatprep.subr.bf16.mxu0 0
      %697 = vmatpush1.bf16.msra.mxu0 %v649
      %698 = vmatprep.subr.bf16.mxu0 0
      %699 = vmatpush1.bf16.msra.mxu0 %v648
      %700 = vmatprep.subr.bf16.mxu0 0
      %701 = vmatpush1.bf16.msra.mxu0 %v647
      %702 = vmatprep.subr.bf16.mxu0 0
      %703 = vmatpush1.bf16.msra.mxu0 %v646
      %704 = vmatprep.subr.bf16.mxu0 0
      %705 = vmatpush1.bf16.msra.mxu0 %v645
      %706 = vmatprep.subr.bf16.mxu0 0
      %707 = vmatpush1.bf16.msra.mxu0 %v644
      %708 = vmatprep.subr.bf16.mxu0 0
      %709 = vmatpush2.bf16.msra.mxu0 %v659
      %710 = vmatprep.subr.bf16.mxu0 0
      %711 = vmatpush2.bf16.msra.mxu0 %v658
      %712 = vmatprep.subr.bf16.mxu0 0
      %713 = vmatpush2.bf16.msra.mxu0 %v657
      %714 = vmatprep.subr.bf16.mxu0 0
      %715 = vmatpush2.bf16.msra.mxu0 %v656
      %716 = vmatprep.subr.bf16.mxu0 0
      %717 = vmatpush2.bf16.msra.mxu0 %v655
      %718 = vmatprep.subr.bf16.mxu0 0
      %719 = vmatpush2.bf16.msra.mxu0 %v654
      %720 = vmatprep.subr.bf16.mxu0 0
      %721 = vmatpush2.bf16.msra.mxu0 %v653
      %722 = vmatprep.subr.bf16.mxu0 0
      %723 = vmatpush2.bf16.msra.mxu0 %v652
      %724 = vmatprep.mubr.bf16.mxu0 %v498
      %725 = vmatmul.mubr.bf16.gmra.mxu0 %v497
      %v726 = vpop.f32.mrf.mxu0
      %v727 = vadd.f32 0.0, %v726
      %v728 = vpop.f32.mrf.mxu0
      %v729 = vpop.f32.mrf.mxu0
      %v730 = vpop.f32.mrf.mxu0
      %731 = vdwg.mxu0
      %732 = vmatprep.subr.bf16.mxu0 0
      %733 = vmatpush1.bf16.msra.mxu0 %v667
      %734 = vmatprep.subr.bf16.mxu0 0
      %735 = vmatpush1.bf16.msra.mxu0 %v666
      %736 = vmatprep.subr.bf16.mxu0 0
      %737 = vmatpush1.bf16.msra.mxu0 %v665
      %738 = vmatprep.subr.bf16.mxu0 0
      %739 = vmatpush1.bf16.msra.mxu0 %v664
      %740 = vmatprep.subr.bf16.mxu0 0
      %741 = vmatpush1.bf16.msra.mxu0 %v663
      %742 = vmatprep.subr.bf16.mxu0 0
      %743 = vmatpush1.bf16.msra.mxu0 %v662
      %744 = vmatprep.subr.bf16.mxu0 0
      %745 = vmatpush1.bf16.msra.mxu0 %v661
      %746 = vmatprep.subr.bf16.mxu0 0
      %747 = vmatpush1.bf16.msra.mxu0 %v660
      %748 = vmatprep.subr.bf16.mxu0 0
      %749 = vmatpush2.bf16.msra.mxu0 0
      %750 = vmatprep.subr.bf16.mxu0 0
      %751 = vmatpush2.bf16.msra.mxu0 0
      %752 = vmatprep.subr.bf16.mxu0 0
      %753 = vmatpush2.bf16.msra.mxu0 0
      %754 = vmatprep.subr.bf16.mxu0 0
      %755 = vmatpush2.bf16.msra.mxu0 0
      %756 = vmatprep.subr.bf16.mxu0 0
      %757 = vmatpush2.bf16.msra.mxu0 0
      %758 = vmatprep.subr.bf16.mxu0 0
      %759 = vmatpush2.bf16.msra.mxu0 0
      %760 = vmatprep.subr.bf16.mxu0 0
      %761 = vmatpush2.bf16.msra.mxu0 0
      %762 = vmatprep.subr.bf16.mxu0 0
      %763 = vmatpush2.bf16.msra.mxu0 0
      %764 = vmatprep.mubr.bf16.mxu0 0
      %765 = vmatmul.mubr.bf16.gmra.mxu0 %v499
      %v766 = vpop.f32.mrf.mxu0
      %v767 = vadd.f32 %v727, %v766
      %v768 = vpop.f32.mrf.mxu0
      %v769 = vpop.f32.mrf.mxu0
      %v770 = vpop.f32.mrf.mxu0
      %771 = vdwg.mxu0
      %v772 = vrot.slane %v767, 4
      %v773 = vadd.f32 %v767, %v772
      %v774 = vrot.slane %v773, 2
      %v775 = vadd.f32 %v773, %v774
      %v776 = vrot.slane %v775, 1
      %v777 = vadd.f32 %v775, %v776
      %v778 = vmul.f32 %v767, %v767
      %v779 = vrot.slane %v778, 4
      %v780 = vadd.f32 %v778, %v779
      %v781 = vrot.slane %v780, 2
      %v782 = vadd.f32 %v780, %v781
      %v783 = vrot.slane %v782, 1
      %v784 = vadd.f32 %v782, %v783
      %v785 = vsel %vm482, %v777, %v784
      %786 = vst [vmem:[%s434] sm:$0x3] %v785
      %787 = vst [vmem:[%s426] sm:$0xff] %v767
      %p788 = scmp.lt.s32.totalorder %s23, 1
      %s789 = scalar_select %p788, %s23, 1
      %p790 = scmp.lt.s32.totalorder %s24, 1
      %s791 = scalar_select %p790, %s24, 1
      %s792 = smul.addr %s789, 2
      %s793 = sadd.s32 %s791, %s792
      %s794 = smul.addr %s793, 8
      %s795 = scalar_lea.vmem %s6, %s794
      %p796 = scmp.lt.s32.totalorder %s23, 1
      %s797 = scalar_select %p796, %s23, 1
      %p798 = scmp.lt.s32.totalorder %s24, 1
      %s799 = scalar_select %p798, %s24, 1
      %s800 = smul.addr %s797, 2
      %s801 = sadd.s32 %s799, %s800
      %s802 = smul.addr %s801, 2
      %s803 = scalar_lea.vmem %s7, %s802
      // Predicated region
      $region45: #{unet_encoding_block.3} parent=43 // pred_check
        %p804 = pneg %p210
      $region46: #{unet_encoding_block.3} parent=43 // pred_check_branch
        %806 = sbr.rel (%p804) target = $region48
      $region47: #{unet_encoding_block.3} parent=43 // pred_region
        _
      $region48: #{unet_encoding_block.3} parent=43 // pred_fallthru
        _
      // Predicated region
      $region49: #{unet_encoding_block.3} parent=43 // pred_check
        %p807 = pneg %p238
      $region50: #{unet_encoding_block.3} parent=43 // pred_check_branch
        %809 = sbr.rel (%p807) target = $region52
      $region51: #{unet_encoding_block.3} parent=43 // pred_region
        _
      $region52: #{unet_encoding_block.3} parent=43 // pred_fallthru
        _
    $region44: #{unet_encoding_block.3} parent=5 // pred_fallthru
      _
    %p810 = scmp.le.s32.totalorder 2, %s14
    // Predicated region
    $region53: #{unet_encoding_block.3} parent=5 // pred_check
      %p811 = pneg %p810
    $region54: #{unet_encoding_block.3} parent=5 // pred_check_branch
      %813 = sbr.rel (%p811) target = $region56
    $region55: #{unet_encoding_block.3} parent=5 // pred_region
      %s814 = ssub.s32 %s14, 2
      // Predicated region
      $region57: #{unet_encoding_block.3} parent=55 // pred_check
        %p815 = pneg %p216
      $region58: #{unet_encoding_block.3} parent=55 // pred_check_branch
        %817 = sbr.rel (%p815) target = $region60
      $region59: #{unet_encoding_block.3} parent=55 // pred_region
        %p818 = scmp.lt.s32.totalorder %s25, 1
        %s819 = scalar_select %p818, %s25, 1
        %p820 = scmp.lt.s32.totalorder %s26, 1
        %s821 = scalar_select %p820, %s26, 1
        %s822 = smul.addr %s819, 2
        %s823 = sadd.s32 %s821, %s822
        %s824 = smul.addr %s823, 8
        %s825 = scalar_lea.vmem %s6, %s824
      $region60: #{unet_encoding_block.3} parent=55 // pred_fallthru
        _
      // Predicated region
      $region61: #{unet_encoding_block.3} parent=55 // pred_check
        %p826 = pneg %p244
      $region62: #{unet_encoding_block.3} parent=55 // pred_check_branch
        %828 = sbr.rel (%p826) target = $region64
      $region63: #{unet_encoding_block.3} parent=55 // pred_region
        %p829 = scmp.lt.s32.totalorder %s25, 1
        %s830 = scalar_select %p829, %s25, 1
        %p831 = scmp.lt.s32.totalorder %s26, 1
        %s832 = scalar_select %p831, %s26, 1
        %s833 = smul.addr %s830, 2
        %s834 = sadd.s32 %s832, %s833
        %s835 = smul.addr %s834, 2
        %s836 = scalar_lea.vmem %s7, %s835
      $region64: #{unet_encoding_block.3} parent=55 // pred_fallthru
        _
    $region56: #{unet_encoding_block.3} parent=5 // pred_fallthru
      _
  $region6: #{unet_encoding_block.3} parent=0 // loop_footer
    %s18 = sadd.s32 1, %s14
  $region7: #{unet_encoding_block.3} parent=0 // loop_footer_branch
    %13 = sbr.rel target = $region3
  $region8: #{unet_encoding_block.3} parent=0 // loop_exit
    _

</llo_original>
